<compile_context>
chip_gen: v5e
topology: v5e:2x2
jax: 0.10.0
libtpu: 0.0.40
codegen_flags: <defaults>
</compile_context>

<pallas_src>
import jax
import jax.numpy as jnp
from jax.experimental import pallas as pl
from jax.experimental.pallas import tpu as pltpu

STEP = 0.1       # InputQuantizer step
EPS = 1e-5       # BatchNorm eps

IN_DIM = 28 * 28     # 784 (kept un-padded; full-dim block is legal)
OUT_PAD = 128        # 100 / 10 padded up to 128 lanes
NUM_CLASSES = 10


def mlp_kernel(x_ref,
               w1_ref, t1_ref,
               w2_ref, t2_ref,
               w3_ref, t3_ref,
               w4_ref, sc4_ref, sh4_ref,
               out_ref):
    # x_ref holds bf16 integer codes round(x/STEP) computed in the wrapper
    # (exact in bf16; STEP is folded into layer-1's BN scale / threshold).
    codes = x_ref[...]

    # BinLinearPos (rounding=False) + BatchNorm + Binarize01Act fused as a
    # threshold compare:  ((h@W)*s + t) > 0  <=>  (h@W) > -t/s  (s > 0).
    # NOTE: strict '>' used; see TODO on the >= boundary in make_params.
    z1 = jnp.dot(codes, w1_ref[...], preferred_element_type=jnp.float32)
    h1 = (z1 > t1_ref[...]).astype(jnp.bfloat16)          # Binarize01Act
    z2 = jnp.dot(h1, w2_ref[...], preferred_element_type=jnp.float32)
    h2 = (z2 > t2_ref[...]).astype(jnp.bfloat16)          # Binarize01Act
    z3 = jnp.dot(h2, w3_ref[...], preferred_element_type=jnp.float32)
    h3 = (z3 > t3_ref[...]).astype(jnp.bfloat16)          # Binarize01Act
    z4 = jnp.dot(h3, w4_ref[...], preferred_element_type=jnp.float32)
    # Last layer: no activation, keep the affine (bias+BN folded) -> logits.
    out_ref[...] = z4 * sc4_ref[...] + sh4_ref[...]


def ternarize(w):
    # TODO(synk): stand-in for TernaryWeightWithMaskFn's learned mask; uses a
    # fixed magnitude threshold instead (won't match a trained checkpoint).
    thr = 0.5 * jnp.mean(jnp.abs(w))
    return jnp.sign(w) * (jnp.abs(w) > thr).astype(w.dtype)


def make_params(key):
    # (fan_in, fan_out, padded_fan_in, padded_fan_out)
    dims = [(IN_DIM, 512, IN_DIM, 512),
            (512, 512, 512, 512),
            (512, 100, 512, OUT_PAD),
            (100, NUM_CLASSES, OUT_PAD, OUT_PAD)]
    params = []
    for li, (fi, fo, fip, fop) in enumerate(dims):
        key, kw, kb, kg, kbeta = jax.random.split(key, 5)
        bound = 1.0 / jnp.sqrt(float(fi))
        # PyTorch nn.Linear stores weight as (out, in); linear is x @ W.T
        w = jax.random.uniform(kw, (fo, fi), jnp.float32, -bound, bound)
        b = jax.random.uniform(kb, (fo,), jnp.float32, -bound, bound)
        w_pos = (ternarize(w) + 1.0) * 0.5           # BinLinearPos -> {0, 0.5, 1}
        w_pos_t = jnp.transpose(w_pos)               # (in, out) for x @ W

        # BatchNormStatsCallbak (eval): fold gamma/beta + running stats.
        if li == 3:  # use_scalar_scale=True on the last BN
            gamma = jnp.broadcast_to(
                jax.random.uniform(kg, (), jnp.float32, 0.5, 1.5), (fo,))
        else:
            gamma = jax.random.uniform(kg, (fo,), jnp.float32, 0.5, 1.5)
        beta = jax.random.uniform(kbeta, (fo,), jnp.float32, -0.1, 0.1)
        running_mean = jnp.zeros((fo,), jnp.float32)
        running_var = jnp.ones((fo,), jnp.float32)
        s = gamma / jnp.sqrt(running_var + EPS)
        t = beta - running_mean * s

        # Fold bias into the shift; fold InputQuantizer STEP into layer-1's
        # scale so the kernel consumes exact integer codes.
        scale = s * (STEP if li == 0 else 1.0)       # > 0 by construction
        shift = b * s + t

        # Zero-pad weights to lane/sublane-friendly shapes; padded rows/cols
        # contribute exact zeros.
        w_pad = jnp.zeros((fip, fop), jnp.float32).at[:fi, :fo].set(w_pos_t)
        w_bf16 = w_pad.astype(jnp.bfloat16)          # {0, 0.5, 1}: exact bf16

        if li < 3:
            # Threshold-fused binarize: (z*s + t) > 0  <=>  z > -t/s  (s > 0).
            # TODO(synk): confirm Binarize01Act uses '>' vs '>='; strict '>'
            # kept here (pre-activation of exactly 0 maps to 0).
            thr = -shift / scale
            thr_pad = jnp.full((fop,), jnp.inf, jnp.float32).at[:fo].set(thr)
            params.append((w_bf16, thr_pad.reshape(1, fop)))
        else:
            scale_pad = jnp.zeros((fop,), jnp.float32).at[:fo].set(scale)
            shift_pad = jnp.zeros((fop,), jnp.float32).at[:fo].set(shift)
            params.append((w_bf16,
                           scale_pad.reshape(1, fop),
                           shift_pad.reshape(1, fop)))
    return params


def _round_up(x, m):
    return ((x + m - 1) // m) * m


def simple_mlp_forward(x_nchw, params, tm=None):
    B = x_nchw.shape[0]
    if tm is None:
        # >=2 grid steps when it matters (so v7x's second TensorCore gets work),
        # tiles capped at 512 rows (amortizes per-step overhead, stays well
        # inside VMEM), clamped down for tiny batches (no wasted MXU rows).
        tm = max(8, min(512, _round_up(pl.cdiv(B, 2), 8)))
    n_tiles = pl.cdiv(B, tm)
    b_pad = n_tiles * tm

    # InputQuantizer(0.1) + Flatten in the wrapper: integer codes in f32
    # (exact), then cast to bf16 (codes are small ints -> exact) so the kernel
    # input DMA is half the bytes of f32 pixels.
    # NOTE: jnp.round is round-half-to-even, same tie rule as torch.round.
    codes = jnp.round(x_nchw.reshape(B, -1).astype(jnp.float32) * (1.0 / STEP))
    codes = jnp.pad(codes, ((0, b_pad - B), (0, 0))).astype(jnp.bfloat16)

    flat_args = [codes]
    # K = 784 block equals the full array dim -> legal, lane-padded by Mosaic.
    in_specs = [pl.BlockSpec((tm, IN_DIM), lambda i: (i, 0))]
    for p in params[:3]:
        w, thr = p
        flat_args += [w, thr]
        # Constant index maps -> weights/thresholds stay VMEM-resident.
        in_specs += [pl.BlockSpec(w.shape, lambda i: (0, 0)),
                     pl.BlockSpec(thr.shape, lambda i: (0, 0))]
    w4, sc4, sh4 = params[3]
    flat_args += [w4, sc4, sh4]
    in_specs += [pl.BlockSpec(w4.shape, lambda i: (0, 0)),
                 pl.BlockSpec(sc4.shape, lambda i: (0, 0)),
                 pl.BlockSpec(sh4.shape, lambda i: (0, 0))]

    out = pl.pallas_call(
        mlp_kernel,
        out_shape=jax.ShapeDtypeStruct((b_pad, OUT_PAD), jnp.float32),
        grid_spec=pltpu.PrefetchScalarGridSpec(
            num_scalar_prefetch=0,
            grid=(n_tiles,),
            in_specs=in_specs,
            out_specs=pl.BlockSpec((tm, OUT_PAD), lambda i: (i, 0)),
        ),
        compiler_params=pltpu.CompilerParams(
            dimension_semantics=("parallel",),   # batch axis shards over TCs
            vmem_limit_bytes=32 << 20,
        ),
    )(*flat_args)
    return out[:B, :NUM_CLASSES]


if __name__ == "__main__":
    key = jax.random.PRNGKey(0)
    key, kx = jax.random.split(key)
    # MNIST-like NCHW input, small batch
    x = jax.random.uniform(kx, (2, 1, 28, 28), jnp.float32, 0.0, 1.0)
    params = make_params(key)

    logits = simple_mlp_forward(x, params)
    jax.block_until_ready(logits)
    assert logits.shape == (2, NUM_CLASSES) and logits.dtype == jnp.float32
    assert bool(jnp.all(jnp.isfinite(logits)))
    print("KERNEL_OK")
</pallas_src>

<mosaic_0001>
module attributes {stable_mosaic.version = 11 : i64} {
  func.func @mlp_kernel(%arg0: i32, %arg1: memref<8x784xbf16, #tpu.memory_space<vmem>>, %arg2: memref<784x512xbf16, #tpu.memory_space<vmem>>, %arg3: memref<1x512xf32, #tpu.memory_space<vmem>>, %arg4: memref<512x512xbf16, #tpu.memory_space<vmem>>, %arg5: memref<1x512xf32, #tpu.memory_space<vmem>>, %arg6: memref<512x128xbf16, #tpu.memory_space<vmem>>, %arg7: memref<1x128xf32, #tpu.memory_space<vmem>>, %arg8: memref<128x128xbf16, #tpu.memory_space<vmem>>, %arg9: memref<1x128xf32, #tpu.memory_space<vmem>>, %arg10: memref<1x128xf32, #tpu.memory_space<vmem>>, %arg11: memref<8x128xf32, #tpu.memory_space<vmem>>) attributes {dimension_semantics = [#tpu.dimension_semantics<parallel>], iteration_bounds = array<i64: 1>, scalar_prefetch = 0 : i64, scratch_operands = 0 : i64, tpu.core_type = #tpu.core_type<tc>, window_params = [{transform_indices = @transform_0, window_bounds = array<i64: 8, 784>}, {pipeline_mode = #tpu.pipeline_mode<synchronous>, transform_indices = @transform_1, window_bounds = array<i64: 784, 512>}, {pipeline_mode = #tpu.pipeline_mode<synchronous>, transform_indices = @transform_2, window_bounds = array<i64: 1, 512>}, {pipeline_mode = #tpu.pipeline_mode<synchronous>, transform_indices = @transform_3, window_bounds = array<i64: 512, 512>}, {pipeline_mode = #tpu.pipeline_mode<synchronous>, transform_indices = @transform_4, window_bounds = array<i64: 1, 512>}, {pipeline_mode = #tpu.pipeline_mode<synchronous>, transform_indices = @transform_5, window_bounds = array<i64: 512, 128>}, {pipeline_mode = #tpu.pipeline_mode<synchronous>, transform_indices = @transform_6, window_bounds = array<i64: 1, 128>}, {pipeline_mode = #tpu.pipeline_mode<synchronous>, transform_indices = @transform_7, window_bounds = array<i64: 128, 128>}, {pipeline_mode = #tpu.pipeline_mode<synchronous>, transform_indices = @transform_8, window_bounds = array<i64: 1, 128>}, {pipeline_mode = #tpu.pipeline_mode<synchronous>, transform_indices = @transform_9, window_bounds = array<i64: 1, 128>}, {transform_indices = @transform_10, window_bounds = array<i64: 8, 128>}]} {
    %c0 = arith.constant 0 : index
    %c0_0 = arith.constant 0 : index
    %0 = vector.load %arg1[%c0, %c0_0] : memref<8x784xbf16, #tpu.memory_space<vmem>>, vector<8x784xbf16>
    %c0_1 = arith.constant 0 : index
    %c0_2 = arith.constant 0 : index
    %1 = vector.load %arg2[%c0_1, %c0_2] : memref<784x512xbf16, #tpu.memory_space<vmem>>, vector<784x512xbf16>
    %cst = arith.constant dense<0.000000e+00> : vector<8x512xf32>
    %2 = tpu.matmul %0, %1, %cst {dimension_numbers = #tpu.dot_dimension_numbers<[1], [0], [0], [1], [0, 0, 1, 1], [], []>} : vector<8x784xbf16>, vector<784x512xbf16>, vector<8x512xf32> -> vector<8x512xf32>
    %c0_3 = arith.constant 0 : index
    %c0_4 = arith.constant 0 : index
    %3 = vector.load %arg3[%c0_3, %c0_4] : memref<1x512xf32, #tpu.memory_space<vmem>>, vector<1x512xf32>
    %4 = vector.broadcast %3 : vector<1x512xf32> to vector<8x512xf32>
    %5 = arith.cmpf ogt, %2, %4 : vector<8x512xf32>
    %6 = arith.extui %5 : vector<8x512xi1> to vector<8x512xi32>
    %7 = arith.sitofp %6 : vector<8x512xi32> to vector<8x512xf32>
    %8 = arith.truncf %7 : vector<8x512xf32> to vector<8x512xbf16>
    %c0_5 = arith.constant 0 : index
    %c0_6 = arith.constant 0 : index
    %9 = vector.load %arg4[%c0_5, %c0_6] : memref<512x512xbf16, #tpu.memory_space<vmem>>, vector<512x512xbf16>
    %cst_7 = arith.constant dense<0.000000e+00> : vector<8x512xf32>
    %10 = tpu.matmul %8, %9, %cst_7 {dimension_numbers = #tpu.dot_dimension_numbers<[1], [0], [0], [1], [0, 0, 1, 1], [], []>} : vector<8x512xbf16>, vector<512x512xbf16>, vector<8x512xf32> -> vector<8x512xf32>
    %c0_8 = arith.constant 0 : index
    %c0_9 = arith.constant 0 : index
    %11 = vector.load %arg5[%c0_8, %c0_9] : memref<1x512xf32, #tpu.memory_space<vmem>>, vector<1x512xf32>
    %12 = vector.broadcast %11 : vector<1x512xf32> to vector<8x512xf32>
    %13 = arith.cmpf ogt, %10, %12 : vector<8x512xf32>
    %14 = arith.extui %13 : vector<8x512xi1> to vector<8x512xi32>
    %15 = arith.sitofp %14 : vector<8x512xi32> to vector<8x512xf32>
    %16 = arith.truncf %15 : vector<8x512xf32> to vector<8x512xbf16>
    %c0_10 = arith.constant 0 : index
    %c0_11 = arith.constant 0 : index
    %17 = vector.load %arg6[%c0_10, %c0_11] : memref<512x128xbf16, #tpu.memory_space<vmem>>, vector<512x128xbf16>
    %cst_12 = arith.constant dense<0.000000e+00> : vector<8x128xf32>
    %18 = tpu.matmul %16, %17, %cst_12 {dimension_numbers = #tpu.dot_dimension_numbers<[1], [0], [0], [1], [0, 0, 1, 1], [], []>} : vector<8x512xbf16>, vector<512x128xbf16>, vector<8x128xf32> -> vector<8x128xf32>
    %c0_13 = arith.constant 0 : index
    %c0_14 = arith.constant 0 : index
    %19 = vector.load %arg7[%c0_13, %c0_14] : memref<1x128xf32, #tpu.memory_space<vmem>>, vector<1x128xf32>
    %20 = vector.broadcast %19 : vector<1x128xf32> to vector<8x128xf32>
    %21 = arith.cmpf ogt, %18, %20 : vector<8x128xf32>
    %22 = arith.extui %21 : vector<8x128xi1> to vector<8x128xi32>
    %23 = arith.sitofp %22 : vector<8x128xi32> to vector<8x128xf32>
    %24 = arith.truncf %23 : vector<8x128xf32> to vector<8x128xbf16>
    %c0_15 = arith.constant 0 : index
    %c0_16 = arith.constant 0 : index
    %25 = vector.load %arg8[%c0_15, %c0_16] : memref<128x128xbf16, #tpu.memory_space<vmem>>, vector<128x128xbf16>
    %cst_17 = arith.constant dense<0.000000e+00> : vector<8x128xf32>
    %26 = tpu.matmul %24, %25, %cst_17 {dimension_numbers = #tpu.dot_dimension_numbers<[1], [0], [0], [1], [0, 0, 1, 1], [], []>} : vector<8x128xbf16>, vector<128x128xbf16>, vector<8x128xf32> -> vector<8x128xf32>
    %c0_18 = arith.constant 0 : index
    %c0_19 = arith.constant 0 : index
    %27 = vector.load %arg9[%c0_18, %c0_19] : memref<1x128xf32, #tpu.memory_space<vmem>>, vector<1x128xf32>
    %28 = vector.broadcast %27 : vector<1x128xf32> to vector<8x128xf32>
    %29 = arith.mulf %26, %28 : vector<8x128xf32>
    %c0_20 = arith.constant 0 : index
    %c0_21 = arith.constant 0 : index
    %30 = vector.load %arg10[%c0_20, %c0_21] : memref<1x128xf32, #tpu.memory_space<vmem>>, vector<1x128xf32>
    %31 = vector.broadcast %30 : vector<1x128xf32> to vector<8x128xf32>
    %32 = arith.addf %29, %31 : vector<8x128xf32>
    %c0_22 = arith.constant 0 : index
    %c0_23 = arith.constant 0 : index
    %33 = vector.load %arg11[%c0_22, %c0_23] : memref<8x128xf32, #tpu.memory_space<vmem>>, vector<8x128xf32>
    tpu.vector_store %arg11[%c0_22, %c0_23], %32 {strides = array<i32>} : memref<8x128xf32, #tpu.memory_space<vmem>>, vector<8x128xf32>,
    return
  }
  func.func @transform_0(%arg0: i32) -> (i32, i32) {
    %c0_i32 = arith.constant 0 : i32
    %c0_i32_0 = arith.constant 0 : i32
    return %arg0, %c0_i32 : i32, i32
  }
  func.func @transform_1(%arg0: i32) -> (i32, i32) {
    %c0_i32 = arith.constant 0 : i32
    %c0_i32_0 = arith.constant 0 : i32
    %c0_i32_1 = arith.constant 0 : i32
    return %c0_i32, %c0_i32_0 : i32, i32
  }
  func.func @transform_2(%arg0: i32) -> (i32, i32) {
    %c0_i32 = arith.constant 0 : i32
    %c0_i32_0 = arith.constant 0 : i32
    %c0_i32_1 = arith.constant 0 : i32
    return %c0_i32, %c0_i32_0 : i32, i32
  }
  func.func @transform_3(%arg0: i32) -> (i32, i32) {
    %c0_i32 = arith.constant 0 : i32
    %c0_i32_0 = arith.constant 0 : i32
    %c0_i32_1 = arith.constant 0 : i32
    return %c0_i32, %c0_i32_0 : i32, i32
  }
  func.func @transform_4(%arg0: i32) -> (i32, i32) {
    %c0_i32 = arith.constant 0 : i32
    %c0_i32_0 = arith.constant 0 : i32
    %c0_i32_1 = arith.constant 0 : i32
    return %c0_i32, %c0_i32_0 : i32, i32
  }
  func.func @transform_5(%arg0: i32) -> (i32, i32) {
    %c0_i32 = arith.constant 0 : i32
    %c0_i32_0 = arith.constant 0 : i32
    %c0_i32_1 = arith.constant 0 : i32
    return %c0_i32, %c0_i32_0 : i32, i32
  }
  func.func @transform_6(%arg0: i32) -> (i32, i32) {
    %c0_i32 = arith.constant 0 : i32
    %c0_i32_0 = arith.constant 0 : i32
    %c0_i32_1 = arith.constant 0 : i32
    return %c0_i32, %c0_i32_0 : i32, i32
  }
  func.func @transform_7(%arg0: i32) -> (i32, i32) {
    %c0_i32 = arith.constant 0 : i32
    %c0_i32_0 = arith.constant 0 : i32
    %c0_i32_1 = arith.constant 0 : i32
    return %c0_i32, %c0_i32_0 : i32, i32
  }
  func.func @transform_8(%arg0: i32) -> (i32, i32) {
    %c0_i32 = arith.constant 0 : i32
    %c0_i32_0 = arith.constant 0 : i32
    %c0_i32_1 = arith.constant 0 : i32
    return %c0_i32, %c0_i32_0 : i32, i32
  }
  func.func @transform_9(%arg0: i32) -> (i32, i32) {
    %c0_i32 = arith.constant 0 : i32
    %c0_i32_0 = arith.constant 0 : i32
    %c0_i32_1 = arith.constant 0 : i32
    return %c0_i32, %c0_i32_0 : i32, i32
  }
  func.func @transform_10(%arg0: i32) -> (i32, i32) {
    %c0_i32 = arith.constant 0 : i32
    %c0_i32_0 = arith.constant 0 : i32
    return %arg0, %c0_i32 : i32, i32
  }
}

</mosaic_0001>

<llo_original>
// kernel: tpu_custom_call.1
$region0: #{tpu_custom_call.1}
  #allocation0 [shape = 'u32[]', space=smem, size = 0x4, offset = 0x4, fixed_abs, tag = 'smem constant byte address 0x4 - core index']
  #allocation1 [shape = 'u32[72,128]{1,0:T(1,128)}', space=vmem, size = 0x9000, scoped, tag = 'internal scratch']
  %s0 = inlined_call_operand.hbm [shape: bf16[8,784], index: 0, kind: input, shape index: {}]
  %s1 = inlined_call_operand.hbm [shape: bf16[784,512], index: 1, kind: input, shape index: {}]
  %s2 = inlined_call_operand.hbm [shape: f32[1,512], index: 2, kind: input, shape index: {}]
  %s3 = inlined_call_operand.hbm [shape: bf16[512,512], index: 3, kind: input, shape index: {}]
  %s4 = inlined_call_operand.hbm [shape: f32[1,512], index: 4, kind: input, shape index: {}]
  %s5 = inlined_call_operand.hbm [shape: bf16[512,128], index: 5, kind: input, shape index: {}]
  %s6 = inlined_call_operand.vmem [shape: f32[1,128], index: 6, kind: input, shape index: {}]
  %s7 = inlined_call_operand.hbm [shape: bf16[128,128], index: 7, kind: input, shape index: {}]
  %s8 = inlined_call_operand.vmem [shape: f32[1,128], index: 8, kind: input, shape index: {}]
  %s9 = inlined_call_operand.vmem [shape: f32[1,128], index: 9, kind: input, shape index: {}]
  %s10 = inlined_call_operand.hbm [shape: f32[8,128], index: 10, kind: output, shape index: {}]
  %s11 = sld [smem:[#allocation0]]
  $region78: #{tpu_custom_call.1} parent=0
    _
  %s13 = ssub.s32 1, %s11
  %s14 = scalar_select 0, %s13, %s11
  $region1: #{tpu_custom_call.1} parent=0
    #allocation2 [shape = 'u8[14336]{0}', space=vmem, size = 0x3800, scoped, tag = 'input window, operand 0, single buffered']
    #allocation3 [shape = 's32[1]{0}', space=sflag, size = 0x4, scoped, tag = 'scoped memory for tpu_custom_call.1']
    #allocation4 [shape = 's32[1]{0}', space=sflag, size = 0x4, scoped, tag = 'scoped memory for tpu_custom_call.1']
    #allocation5 [shape = 'u8[802816]{0}', space=vmem, size = 0xc4000, scoped, tag = 'input window, operand 1, single buffered']
    #allocation6 [shape = 's32[1]{0}', space=sflag, size = 0x4, scoped, tag = 'scoped memory for tpu_custom_call.1']
    #allocation7 [shape = 'u8[2048]{0}', space=vmem, size = 0x800, scoped, tag = 'input window, operand 2, single buffered']
    #allocation8 [shape = 'u8[524288]{0}', space=vmem, size = 0x80000, scoped, tag = 'input window, operand 3, single buffered']
    #allocation9 [shape = 's32[1]{0}', space=sflag, size = 0x4, scoped, tag = 'scoped memory for tpu_custom_call.1']
    #allocation10 [shape = 'u8[2048]{0}', space=vmem, size = 0x800, scoped, tag = 'input window, operand 4, single buffered']
    #allocation11 [shape = 'u8[131072]{0}', space=vmem, size = 0x20000, scoped, tag = 'input window, operand 5, single buffered']
    #allocation12 [shape = 's32[1]{0}', space=sflag, size = 0x4, scoped, tag = 'scoped memory for tpu_custom_call.1']
    #allocation13 [shape = 'u8[32768]{0}', space=vmem, size = 0x8000, scoped, tag = 'input window, operand 7, single buffered']
    #allocation14 [shape = 'u8[4096]{0}', space=vmem, size = 0x1000, scoped, tag = 'output window, operand 0, single buffered']
    %15 = vsyncpa [#allocation3], 0
    %16 = vsyncpa [#allocation6], 0
    %17 = vsyncpa [#allocation9], 0
    %18 = vsyncpa [#allocation12], 0
    %19 = vsyncpa [#allocation4], 0
    // Predicated region
    $region2: #{tpu_custom_call.1} parent=1 // pred_check
      _
    $region3: #{tpu_custom_call.1} parent=1 // pred_check_branch
      %21 = sbr.rel (0) target = $region5
    $region4: #{tpu_custom_call.1} parent=1 // pred_region
      %23 = vsyncadd [#allocation3], 0
      %s25 = sshll.u32 %s0, 4
      %s26 = int_to_ptr.hbm [resolvable:$true] %s25
      %s27 = sshll.u32 [#allocation2], 4
      %s28 = int_to_ptr.vmem [resolvable:$true] %s27
      %30 = dma.hbm_to_vmem [thread:$0]  %s26, 448, %s28, [#allocation3]
    $region5: #{tpu_custom_call.1} parent=1 // pred_fallthru
      _
    // Predicated region
    $region6: #{tpu_custom_call.1} parent=1 // pred_check
      _
    $region7: #{tpu_custom_call.1} parent=1 // pred_check_branch
      %32 = sbr.rel (0) target = $region9
    $region8: #{tpu_custom_call.1} parent=1 // pred_region
      %34 = vsyncadd [#allocation6], 0
      %s35 = sshll.u32 %s1, 4
      %s36 = int_to_ptr.hbm [resolvable:$true] %s35
      %s37 = sshll.u32 [#allocation5], 4
      %s38 = int_to_ptr.vmem [resolvable:$true] %s37
      %43 = dma.hbm_to_vmem [thread:$0]  %s36, 25088, %s38, [#allocation6], 256, 256, 16
    $region9: #{tpu_custom_call.1} parent=1 // pred_fallthru
      _
    // Predicated region
    $region10: #{tpu_custom_call.1} parent=1 // pred_check
      _
    $region11: #{tpu_custom_call.1} parent=1 // pred_check_branch
      %45 = sbr.rel (0) target = $region13
    $region12: #{tpu_custom_call.1} parent=1 // pred_region
      %47 = vsyncadd [#allocation6], 0
      %s49 = sshll.u32 %s2, 4
      %s50 = int_to_ptr.hbm [resolvable:$true] %s49
      %s51 = sshll.u32 [#allocation7], 4
      %s52 = int_to_ptr.vmem [resolvable:$true] %s51
      %54 = dma.hbm_to_vmem [thread:$0]  %s50, 64, %s52, [#allocation6]
    $region13: #{tpu_custom_call.1} parent=1 // pred_fallthru
      _
    // Predicated region
    $region14: #{tpu_custom_call.1} parent=1 // pred_check
      _
    $region15: #{tpu_custom_call.1} parent=1 // pred_check_branch
      %56 = sbr.rel (0) target = $region17
    $region16: #{tpu_custom_call.1} parent=1 // pred_region
      %58 = vsyncadd [#allocation9], 0
      %s59 = sshll.u32 %s3, 4
      %s60 = int_to_ptr.hbm [resolvable:$true] %s59
      %s61 = sshll.u32 [#allocation8], 4
      %s62 = int_to_ptr.vmem [resolvable:$true] %s61
      %67 = dma.hbm_to_vmem [thread:$0]  %s60, 16384, %s62, [#allocation9], 256, 256, 16
    $region17: #{tpu_custom_call.1} parent=1 // pred_fallthru
      _
    // Predicated region
    $region18: #{tpu_custom_call.1} parent=1 // pred_check
      _
    $region19: #{tpu_custom_call.1} parent=1 // pred_check_branch
      %69 = sbr.rel (0) target = $region21
    $region20: #{tpu_custom_call.1} parent=1 // pred_region
      %71 = vsyncadd [#allocation9], 0
      %s73 = sshll.u32 %s4, 4
      %s74 = int_to_ptr.hbm [resolvable:$true] %s73
      %s75 = sshll.u32 [#allocation10], 4
      %s76 = int_to_ptr.vmem [resolvable:$true] %s75
      %78 = dma.hbm_to_vmem [thread:$0]  %s74, 64, %s76, [#allocation9]
    $region21: #{tpu_custom_call.1} parent=1 // pred_fallthru
      _
    // Predicated region
    $region22: #{tpu_custom_call.1} parent=1 // pred_check
      _
    $region23: #{tpu_custom_call.1} parent=1 // pred_check_branch
      %80 = sbr.rel (0) target = $region25
    $region24: #{tpu_custom_call.1} parent=1 // pred_region
      %82 = vsyncadd [#allocation12], 0
      %s83 = sshll.u32 %s5, 4
      %s84 = int_to_ptr.hbm [resolvable:$true] %s83
      %s85 = sshll.u32 [#allocation11], 4
      %s86 = int_to_ptr.vmem [resolvable:$true] %s85
      %91 = dma.hbm_to_vmem [thread:$0]  %s84, 4096, %s86, [#allocation12], 64, 64, 4
    $region25: #{tpu_custom_call.1} parent=1 // pred_fallthru
      _
    // Predicated region
    $region26: #{tpu_custom_call.1} parent=1 // pred_check
      _
    $region27: #{tpu_custom_call.1} parent=1 // pred_check_branch
      %93 = sbr.rel (0) target = $region29
    $region28: #{tpu_custom_call.1} parent=1 // pred_region
      _
    $region29: #{tpu_custom_call.1} parent=1 // pred_fallthru
      _
    // Predicated region
    $region30: #{tpu_custom_call.1} parent=1 // pred_check
      _
    $region31: #{tpu_custom_call.1} parent=1 // pred_check_branch
      %95 = sbr.rel (0) target = $region33
    $region32: #{tpu_custom_call.1} parent=1 // pred_region
      %97 = vsyncadd [#allocation12], 0
      %s98 = sshll.u32 %s7, 4
      %s99 = int_to_ptr.hbm [resolvable:$true] %s98
      %s100 = sshll.u32 [#allocation13], 4
      %s101 = int_to_ptr.vmem [resolvable:$true] %s100
      %106 = dma.hbm_to_vmem [thread:$0]  %s99, 1024, %s101, [#allocation12], 64, 64, 4
    $region33: #{tpu_custom_call.1} parent=1 // pred_fallthru
      _
    // Predicated region
    $region34: #{tpu_custom_call.1} parent=1 // pred_check
      _
    $region35: #{tpu_custom_call.1} parent=1 // pred_check_branch
      %108 = sbr.rel (0) target = $region37
    $region36: #{tpu_custom_call.1} parent=1 // pred_region
      _
    $region37: #{tpu_custom_call.1} parent=1 // pred_fallthru
      _
    // Predicated region
    $region38: #{tpu_custom_call.1} parent=1 // pred_check
      _
    $region39: #{tpu_custom_call.1} parent=1 // pred_check_branch
      %110 = sbr.rel (0) target = $region41
    $region40: #{tpu_custom_call.1} parent=1 // pred_region
      _
    $region41: #{tpu_custom_call.1} parent=1 // pred_fallthru
      _
    // Predicated region
    $region42: #{tpu_custom_call.1} parent=1 // pred_check
      _
    $region43: #{tpu_custom_call.1} parent=1 // pred_check_branch
      %112 = sbr.rel (0) target = $region45
    $region44: #{tpu_custom_call.1} parent=1 // pred_region
      %114 = dma.done [#allocation3], 448
    $region45: #{tpu_custom_call.1} parent=1 // pred_fallthru
      _
    // Predicated region
    $region46: #{tpu_custom_call.1} parent=1 // pred_check
      _
    $region47: #{tpu_custom_call.1} parent=1 // pred_check_branch
      %116 = sbr.rel (0) target = $region49
    $region48: #{tpu_custom_call.1} parent=1 // pred_region
      %118 = dma.done [#allocation6], 25088
    $region49: #{tpu_custom_call.1} parent=1 // pred_fallthru
      _
    // Predicated region
    $region50: #{tpu_custom_call.1} parent=1 // pred_check
      _
    $region51: #{tpu_custom_call.1} parent=1 // pred_check_branch
      %120 = sbr.rel (0) target = $region53
    $region52: #{tpu_custom_call.1} parent=1 // pred_region
      %122 = dma.done [#allocation6], 64
    $region53: #{tpu_custom_call.1} parent=1 // pred_fallthru
      _
    // Predicated region
    $region54: #{tpu_custom_call.1} parent=1 // pred_check
      _
    $region55: #{tpu_custom_call.1} parent=1 // pred_check_branch
      %124 = sbr.rel (0) target = $region57
    $region56: #{tpu_custom_call.1} parent=1 // pred_region
      %126 = dma.done [#allocation9], 16384
    $region57: #{tpu_custom_call.1} parent=1 // pred_fallthru
      _
    // Predicated region
    $region58: #{tpu_custom_call.1} parent=1 // pred_check
      _
    $region59: #{tpu_custom_call.1} parent=1 // pred_check_branch
      %128 = sbr.rel (0) target = $region61
    $region60: #{tpu_custom_call.1} parent=1 // pred_region
      %130 = dma.done [#allocation9], 64
    $region61: #{tpu_custom_call.1} parent=1 // pred_fallthru
      _
    // Predicated region
    $region62: #{tpu_custom_call.1} parent=1 // pred_check
      _
    $region63: #{tpu_custom_call.1} parent=1 // pred_check_branch
      %132 = sbr.rel (0) target = $region65
    $region64: #{tpu_custom_call.1} parent=1 // pred_region
      %134 = dma.done [#allocation12], 4096
    $region65: #{tpu_custom_call.1} parent=1 // pred_fallthru
      _
    // Predicated region
    $region66: #{tpu_custom_call.1} parent=1 // pred_check
      _
    $region67: #{tpu_custom_call.1} parent=1 // pred_check_branch
      %136 = sbr.rel (0) target = $region69
    $region68: #{tpu_custom_call.1} parent=1 // pred_region
      %138 = dma.done [#allocation12], 1024
    $region69: #{tpu_custom_call.1} parent=1 // pred_fallthru
      _
    %v140 = vld [vmem:[#allocation2] sm:$0xff]
    %v141 = vld [vmem:[#allocation2 + $0x8] sm:$0xff]
    %v142 = vld [vmem:[#allocation2 + $0x10] sm:$0xff]
    %v143 = vld [vmem:[#allocation2 + $0x18] sm:$0xf]
    %v144 = vld [vmem:[#allocation5] sm:$0xff]
    %v145 = vld [vmem:[#allocation5 + $0x8] sm:$0xff]
    %v146 = vld [vmem:[#allocation5 + $0x10] sm:$0xff]
    %v147 = vld [vmem:[#allocation5 + $0x18] sm:$0xff]
    %v148 = vld [vmem:[#allocation5 + $0x20] sm:$0xff]
    %v149 = vld [vmem:[#allocation5 + $0x28] sm:$0xff]
    %v150 = vld [vmem:[#allocation5 + $0x30] sm:$0xff]
    %v151 = vld [vmem:[#allocation5 + $0x38] sm:$0xff]
    %v152 = vld [vmem:[#allocation5 + $0x40] sm:$0xff]
    %v153 = vld [vmem:[#allocation5 + $0x48] sm:$0xff]
    %v154 = vld [vmem:[#allocation5 + $0x50] sm:$0xff]
    %v155 = vld [vmem:[#allocation5 + $0x58] sm:$0xff]
    %v156 = vld [vmem:[#allocation5 + $0x60] sm:$0xff]
    %v157 = vld [vmem:[#allocation5 + $0x68] sm:$0xff]
    %v158 = vld [vmem:[#allocation5 + $0x70] sm:$0xff]
    %v159 = vld [vmem:[#allocation5 + $0x78] sm:$0xff]
    %v160 = vld [vmem:[#allocation5 + $0x80] sm:$0xff]
    %v161 = vld [vmem:[#allocation5 + $0x88] sm:$0xff]
    %v162 = vld [vmem:[#allocation5 + $0x90] sm:$0xff]
    %v163 = vld [vmem:[#allocation5 + $0x98] sm:$0xff]
    %v164 = vld [vmem:[#allocation5 + $0xa0] sm:$0xff]
    %v165 = vld [vmem:[#allocation5 + $0xa8] sm:$0xff]
    %v166 = vld [vmem:[#allocation5 + $0xb0] sm:$0xff]
    %v167 = vld [vmem:[#allocation5 + $0xb8] sm:$0xff]
    %v168 = vld [vmem:[#allocation5 + $0xc0] sm:$0xff]
    %v169 = vld [vmem:[#allocation5 + $0xc8] sm:$0xff]
    %v170 = vld [vmem:[#allocation5 + $0xd0] sm:$0xff]
    %v171 = vld [vmem:[#allocation5 + $0xd8] sm:$0xff]
    %v172 = vld [vmem:[#allocation5 + $0xe0] sm:$0xff]
    %v173 = vld [vmem:[#allocation5 + $0xe8] sm:$0xff]
    %v174 = vld [vmem:[#allocation5 + $0xf0] sm:$0xff]
    %v175 = vld [vmem:[#allocation5 + $0xf8] sm:$0xff]
    %v176 = vld [vmem:[#allocation5 + $0x100] sm:$0xff]
    %v177 = vld [vmem:[#allocation5 + $0x108] sm:$0xff]
    %v178 = vld [vmem:[#allocation5 + $0x110] sm:$0xff]
    %v179 = vld [vmem:[#allocation5 + $0x118] sm:$0xff]
    %v180 = vld [vmem:[#allocation5 + $0x120] sm:$0xff]
    %v181 = vld [vmem:[#allocation5 + $0x128] sm:$0xff]
    %v182 = vld [vmem:[#allocation5 + $0x130] sm:$0xff]
    %v183 = vld [vmem:[#allocation5 + $0x138] sm:$0xff]
    %v184 = vld [vmem:[#allocation5 + $0x140] sm:$0xff]
    %v185 = vld [vmem:[#allocation5 + $0x148] sm:$0xff]
    %v186 = vld [vmem:[#allocation5 + $0x150] sm:$0xff]
    %v187 = vld [vmem:[#allocation5 + $0x158] sm:$0xff]
    %v188 = vld [vmem:[#allocation5 + $0x160] sm:$0xff]
    %v189 = vld [vmem:[#allocation5 + $0x168] sm:$0xff]
    %v190 = vld [vmem:[#allocation5 + $0x170] sm:$0xff]
    %v191 = vld [vmem:[#allocation5 + $0x178] sm:$0xff]
    %v192 = vld [vmem:[#allocation5 + $0x180] sm:$0xff]
    %v193 = vld [vmem:[#allocation5 + $0x188] sm:$0xff]
    %v194 = vld [vmem:[#allocation5 + $0x190] sm:$0xff]
    %v195 = vld [vmem:[#allocation5 + $0x198] sm:$0xff]
    %v196 = vld [vmem:[#allocation5 + $0x1a0] sm:$0xff]
    %v197 = vld [vmem:[#allocation5 + $0x1a8] sm:$0xff]
    %v198 = vld [vmem:[#allocation5 + $0x1b0] sm:$0xff]
    %v199 = vld [vmem:[#allocation5 + $0x1b8] sm:$0xff]
    %v200 = vld [vmem:[#allocation5 + $0x1c0] sm:$0xff]
    %v201 = vld [vmem:[#allocation5 + $0x1c8] sm:$0xff]
    %v202 = vld [vmem:[#allocation5 + $0x1d0] sm:$0xff]
    %v203 = vld [vmem:[#allocation5 + $0x1d8] sm:$0xff]
    %v204 = vld [vmem:[#allocation5 + $0x1e0] sm:$0xff]
    %v205 = vld [vmem:[#allocation5 + $0x1e8] sm:$0xff]
    %v206 = vld [vmem:[#allocation5 + $0x1f0] sm:$0xff]
    %v207 = vld [vmem:[#allocation5 + $0x1f8] sm:$0xff]
    %v208 = vld [vmem:[#allocation5 + $0x200] sm:$0xff]
    %v209 = vld [vmem:[#allocation5 + $0x208] sm:$0xff]
    %v210 = vld [vmem:[#allocation5 + $0x210] sm:$0xff]
    %v211 = vld [vmem:[#allocation5 + $0x218] sm:$0xff]
    %v212 = vld [vmem:[#allocation5 + $0x220] sm:$0xff]
    %v213 = vld [vmem:[#allocation5 + $0x228] sm:$0xff]
    %v214 = vld [vmem:[#allocation5 + $0x230] sm:$0xff]
    %v215 = vld [vmem:[#allocation5 + $0x238] sm:$0xff]
    %v216 = vld [vmem:[#allocation5 + $0x240] sm:$0xff]
    %v217 = vld [vmem:[#allocation5 + $0x248] sm:$0xff]
    %v218 = vld [vmem:[#allocation5 + $0x250] sm:$0xff]
    %v219 = vld [vmem:[#allocation5 + $0x258] sm:$0xff]
    %v220 = vld [vmem:[#allocation5 + $0x260] sm:$0xff]
    %v221 = vld [vmem:[#allocation5 + $0x268] sm:$0xff]
    %v222 = vld [vmem:[#allocation5 + $0x270] sm:$0xff]
    %v223 = vld [vmem:[#allocation5 + $0x278] sm:$0xff]
    %v224 = vld [vmem:[#allocation5 + $0x280] sm:$0xff]
    %v225 = vld [vmem:[#allocation5 + $0x288] sm:$0xff]
    %v226 = vld [vmem:[#allocation5 + $0x290] sm:$0xff]
    %v227 = vld [vmem:[#allocation5 + $0x298] sm:$0xff]
    %v228 = vld [vmem:[#allocation5 + $0x2a0] sm:$0xff]
    %v229 = vld [vmem:[#allocation5 + $0x2a8] sm:$0xff]
    %v230 = vld [vmem:[#allocation5 + $0x2b0] sm:$0xff]
    %v231 = vld [vmem:[#allocation5 + $0x2b8] sm:$0xff]
    %v232 = vld [vmem:[#allocation5 + $0x2c0] sm:$0xff]
    %v233 = vld [vmem:[#allocation5 + $0x2c8] sm:$0xff]
    %v234 = vld [vmem:[#allocation5 + $0x2d0] sm:$0xff]
    %v235 = vld [vmem:[#allocation5 + $0x2d8] sm:$0xff]
    %v236 = vld [vmem:[#allocation5 + $0x2e0] sm:$0xff]
    %v237 = vld [vmem:[#allocation5 + $0x2e8] sm:$0xff]
    %v238 = vld [vmem:[#allocation5 + $0x2f0] sm:$0xff]
    %v239 = vld [vmem:[#allocation5 + $0x2f8] sm:$0xff]
    %v240 = vld [vmem:[#allocation5 + $0x300] sm:$0xff]
    %v241 = vld [vmem:[#allocation5 + $0x308] sm:$0xff]
    %v242 = vld [vmem:[#allocation5 + $0x310] sm:$0xff]
    %v243 = vld [vmem:[#allocation5 + $0x318] sm:$0xff]
    %v244 = vld [vmem:[#allocation5 + $0x320] sm:$0xff]
    %v245 = vld [vmem:[#allocation5 + $0x328] sm:$0xff]
    %v246 = vld [vmem:[#allocation5 + $0x330] sm:$0xff]
    %v247 = vld [vmem:[#allocation5 + $0x338] sm:$0xff]
    %v248 = vld [vmem:[#allocation5 + $0x340] sm:$0xff]
    %v249 = vld [vmem:[#allocation5 + $0x348] sm:$0xff]
    %v250 = vld [vmem:[#allocation5 + $0x350] sm:$0xff]
    %v251 = vld [vmem:[#allocation5 + $0x358] sm:$0xff]
    %v252 = vld [vmem:[#allocation5 + $0x360] sm:$0xff]
    %v253 = vld [vmem:[#allocation5 + $0x368] sm:$0xff]
    %v254 = vld [vmem:[#allocation5 + $0x370] sm:$0xff]
    %v255 = vld [vmem:[#allocation5 + $0x378] sm:$0xff]
    %v256 = vld [vmem:[#allocation5 + $0x380] sm:$0xff]
    %v257 = vld [vmem:[#allocation5 + $0x388] sm:$0xff]
    %v258 = vld [vmem:[#allocation5 + $0x390] sm:$0xff]
    %v259 = vld [vmem:[#allocation5 + $0x398] sm:$0xff]
    %v260 = vld [vmem:[#allocation5 + $0x3a0] sm:$0xff]
    %v261 = vld [vmem:[#allocation5 + $0x3a8] sm:$0xff]
    %v262 = vld [vmem:[#allocation5 + $0x3b0] sm:$0xff]
    %v263 = vld [vmem:[#allocation5 + $0x3b8] sm:$0xff]
    %v264 = vld [vmem:[#allocation5 + $0x3c0] sm:$0xff]
    %v265 = vld [vmem:[#allocation5 + $0x3c8] sm:$0xff]
    %v266 = vld [vmem:[#allocation5 + $0x3d0] sm:$0xff]
    %v267 = vld [vmem:[#allocation5 + $0x3d8] sm:$0xff]
    %v268 = vld [vmem:[#allocation5 + $0x3e0] sm:$0xff]
    %v269 = vld [vmem:[#allocation5 + $0x3e8] sm:$0xff]
    %v270 = vld [vmem:[#allocation5 + $0x3f0] sm:$0xff]
    %v271 = vld [vmem:[#allocation5 + $0x3f8] sm:$0xff]
    %v272 = vld [vmem:[#allocation5 + $0x400] sm:$0xff]
    %v273 = vld [vmem:[#allocation5 + $0x408] sm:$0xff]
    %v274 = vld [vmem:[#allocation5 + $0x410] sm:$0xff]
    %v275 = vld [vmem:[#allocation5 + $0x418] sm:$0xff]
    %v276 = vld [vmem:[#allocation5 + $0x420] sm:$0xff]
    %v277 = vld [vmem:[#allocation5 + $0x428] sm:$0xff]
    %v278 = vld [vmem:[#allocation5 + $0x430] sm:$0xff]
    %v279 = vld [vmem:[#allocation5 + $0x438] sm:$0xff]
    %v280 = vld [vmem:[#allocation5 + $0x440] sm:$0xff]
    %v281 = vld [vmem:[#allocation5 + $0x448] sm:$0xff]
    %v282 = vld [vmem:[#allocation5 + $0x450] sm:$0xff]
    %v283 = vld [vmem:[#allocation5 + $0x458] sm:$0xff]
    %v284 = vld [vmem:[#allocation5 + $0x460] sm:$0xff]
    %v285 = vld [vmem:[#allocation5 + $0x468] sm:$0xff]
    %v286 = vld [vmem:[#allocation5 + $0x470] sm:$0xff]
    %v287 = vld [vmem:[#allocation5 + $0x478] sm:$0xff]
    %v288 = vld [vmem:[#allocation5 + $0x480] sm:$0xff]
    %v289 = vld [vmem:[#allocation5 + $0x488] sm:$0xff]
    %v290 = vld [vmem:[#allocation5 + $0x490] sm:$0xff]
    %v291 = vld [vmem:[#allocation5 + $0x498] sm:$0xff]
    %v292 = vld [vmem:[#allocation5 + $0x4a0] sm:$0xff]
    %v293 = vld [vmem:[#allocation5 + $0x4a8] sm:$0xff]
    %v294 = vld [vmem:[#allocation5 + $0x4b0] sm:$0xff]
    %v295 = vld [vmem:[#allocation5 + $0x4b8] sm:$0xff]
    %v296 = vld [vmem:[#allocation5 + $0x4c0] sm:$0xff]
    %v297 = vld [vmem:[#allocation5 + $0x4c8] sm:$0xff]
    %v298 = vld [vmem:[#allocation5 + $0x4d0] sm:$0xff]
    %v299 = vld [vmem:[#allocation5 + $0x4d8] sm:$0xff]
    %v300 = vld [vmem:[#allocation5 + $0x4e0] sm:$0xff]
    %v301 = vld [vmem:[#allocation5 + $0x4e8] sm:$0xff]
    %v302 = vld [vmem:[#allocation5 + $0x4f0] sm:$0xff]
    %v303 = vld [vmem:[#allocation5 + $0x4f8] sm:$0xff]
    %v304 = vld [vmem:[#allocation5 + $0x500] sm:$0xff]
    %v305 = vld [vmem:[#allocation5 + $0x508] sm:$0xff]
    %v306 = vld [vmem:[#allocation5 + $0x510] sm:$0xff]
    %v307 = vld [vmem:[#allocation5 + $0x518] sm:$0xff]
    %v308 = vld [vmem:[#allocation5 + $0x520] sm:$0xff]
    %v309 = vld [vmem:[#allocation5 + $0x528] sm:$0xff]
    %v310 = vld [vmem:[#allocation5 + $0x530] sm:$0xff]
    %v311 = vld [vmem:[#allocation5 + $0x538] sm:$0xff]
    %v312 = vld [vmem:[#allocation5 + $0x540] sm:$0xff]
    %v313 = vld [vmem:[#allocation5 + $0x548] sm:$0xff]
    %v314 = vld [vmem:[#allocation5 + $0x550] sm:$0xff]
    %v315 = vld [vmem:[#allocation5 + $0x558] sm:$0xff]
    %v316 = vld [vmem:[#allocation5 + $0x560] sm:$0xff]
    %v317 = vld [vmem:[#allocation5 + $0x568] sm:$0xff]
    %v318 = vld [vmem:[#allocation5 + $0x570] sm:$0xff]
    %v319 = vld [vmem:[#allocation5 + $0x578] sm:$0xff]
    %v320 = vld [vmem:[#allocation5 + $0x580] sm:$0xff]
    %v321 = vld [vmem:[#allocation5 + $0x588] sm:$0xff]
    %v322 = vld [vmem:[#allocation5 + $0x590] sm:$0xff]
    %v323 = vld [vmem:[#allocation5 + $0x598] sm:$0xff]
    %v324 = vld [vmem:[#allocation5 + $0x5a0] sm:$0xff]
    %v325 = vld [vmem:[#allocation5 + $0x5a8] sm:$0xff]
    %v326 = vld [vmem:[#allocation5 + $0x5b0] sm:$0xff]
    %v327 = vld [vmem:[#allocation5 + $0x5b8] sm:$0xff]
    %v328 = vld [vmem:[#allocation5 + $0x5c0] sm:$0xff]
    %v329 = vld [vmem:[#allocation5 + $0x5c8] sm:$0xff]
    %v330 = vld [vmem:[#allocation5 + $0x5d0] sm:$0xff]
    %v331 = vld [vmem:[#allocation5 + $0x5d8] sm:$0xff]
    %v332 = vld [vmem:[#allocation5 + $0x5e0] sm:$0xff]
    %v333 = vld [vmem:[#allocation5 + $0x5e8] sm:$0xff]
    %v334 = vld [vmem:[#allocation5 + $0x5f0] sm:$0xff]
    %v335 = vld [vmem:[#allocation5 + $0x5f8] sm:$0xff]
    %v336 = vld [vmem:[#allocation5 + $0x600] sm:$0xff]
    %v337 = vld [vmem:[#allocation5 + $0x608] sm:$0xff]
    %v338 = vld [vmem:[#allocation5 + $0x610] sm:$0xff]
    %v339 = vld [vmem:[#allocation5 + $0x618] sm:$0xff]
    %v344 = vunpack.c.l.b16 %v140
    %v345 = vunpack.c.h.b16 %v140
    %v346 = vunpack.c.l.b16 %v141
    %v347 = vunpack.c.h.b16 %v141
    %v348 = vunpack.c.l.b16 %v142
    %v349 = vunpack.c.h.b16 %v142
    %v350 = vunpack.c.l.b16 %v143
    %v351 = vpack.c.b16 %v344, %v344
    %v352 = vpack.c.b16 %v345, %v345
    %v353 = vpack.c.b16 %v346, %v346
    %v354 = vpack.c.b16 %v347, %v347
    %v355 = vpack.c.b16 %v348, %v348
    %v356 = vpack.c.b16 %v349, %v349
    %v357 = vpack.c.b16 %v350, %v350
    %v560 = vunpack.c.l.b16 %v144
    %v561 = vunpack.c.h.b16 %v144
    %v562 = vunpack.c.l.b16 %v145
    %v563 = vunpack.c.h.b16 %v145
    %v564 = vunpack.c.l.b16 %v146
    %v565 = vunpack.c.h.b16 %v146
    %v566 = vunpack.c.l.b16 %v147
    %v567 = vunpack.c.h.b16 %v147
    %v568 = vunpack.c.l.b16 %v148
    %v569 = vunpack.c.h.b16 %v148
    %v570 = vunpack.c.l.b16 %v149
    %v571 = vunpack.c.h.b16 %v149
    %v572 = vunpack.c.l.b16 %v150
    %v573 = vunpack.c.h.b16 %v150
    %v574 = vunpack.c.l.b16 %v151
    %v575 = vunpack.c.h.b16 %v151
    %v576 = vunpack.c.l.b16 %v152
    %v577 = vunpack.c.h.b16 %v152
    %v578 = vunpack.c.l.b16 %v153
    %v579 = vunpack.c.h.b16 %v153
    %v580 = vunpack.c.l.b16 %v154
    %v581 = vunpack.c.h.b16 %v154
    %v582 = vunpack.c.l.b16 %v155
    %v583 = vunpack.c.h.b16 %v155
    %v584 = vunpack.c.l.b16 %v156
    %v585 = vunpack.c.h.b16 %v156
    %v586 = vunpack.c.l.b16 %v157
    %v587 = vunpack.c.h.b16 %v157
    %v588 = vunpack.c.l.b16 %v158
    %v589 = vunpack.c.h.b16 %v158
    %v590 = vunpack.c.l.b16 %v159
    %v591 = vunpack.c.h.b16 %v159
    %v592 = vunpack.c.l.b16 %v160
    %v593 = vunpack.c.h.b16 %v160
    %v594 = vunpack.c.l.b16 %v161
    %v595 = vunpack.c.h.b16 %v161
    %v596 = vunpack.c.l.b16 %v162
    %v597 = vunpack.c.h.b16 %v162
    %v598 = vunpack.c.l.b16 %v163
    %v599 = vunpack.c.h.b16 %v163
    %v600 = vunpack.c.l.b16 %v164
    %v601 = vunpack.c.h.b16 %v164
    %v602 = vunpack.c.l.b16 %v165
    %v603 = vunpack.c.h.b16 %v165
    %v604 = vunpack.c.l.b16 %v166
    %v605 = vunpack.c.h.b16 %v166
    %v606 = vunpack.c.l.b16 %v167
    %v607 = vunpack.c.h.b16 %v167
    %v608 = vunpack.c.l.b16 %v168
    %v609 = vunpack.c.h.b16 %v168
    %v610 = vunpack.c.l.b16 %v169
    %v611 = vunpack.c.h.b16 %v169
    %v612 = vunpack.c.l.b16 %v170
    %v613 = vunpack.c.h.b16 %v170
    %v614 = vunpack.c.l.b16 %v171
    %v615 = vunpack.c.h.b16 %v171
    %v616 = vunpack.c.l.b16 %v172
    %v617 = vunpack.c.h.b16 %v172
    %v618 = vunpack.c.l.b16 %v173
    %v619 = vunpack.c.h.b16 %v173
    %v620 = vunpack.c.l.b16 %v174
    %v621 = vunpack.c.h.b16 %v174
    %v622 = vunpack.c.l.b16 %v175
    %v623 = vunpack.c.h.b16 %v175
    %v624 = vunpack.c.l.b16 %v176
    %v625 = vunpack.c.h.b16 %v176
    %v626 = vunpack.c.l.b16 %v177
    %v627 = vunpack.c.h.b16 %v177
    %v628 = vunpack.c.l.b16 %v178
    %v629 = vunpack.c.h.b16 %v178
    %v630 = vunpack.c.l.b16 %v179
    %v631 = vunpack.c.h.b16 %v179
    %v632 = vunpack.c.l.b16 %v180
    %v633 = vunpack.c.h.b16 %v180
    %v634 = vunpack.c.l.b16 %v181
    %v635 = vunpack.c.h.b16 %v181
    %v636 = vunpack.c.l.b16 %v182
    %v637 = vunpack.c.h.b16 %v182
    %v638 = vunpack.c.l.b16 %v183
    %v639 = vunpack.c.h.b16 %v183
    %v640 = vunpack.c.l.b16 %v184
    %v641 = vunpack.c.h.b16 %v184
    %v642 = vunpack.c.l.b16 %v185
    %v643 = vunpack.c.h.b16 %v185
    %v644 = vunpack.c.l.b16 %v186
    %v645 = vunpack.c.h.b16 %v186
    %v646 = vunpack.c.l.b16 %v187
    %v647 = vunpack.c.h.b16 %v187
    %v648 = vunpack.c.l.b16 %v188
    %v649 = vunpack.c.h.b16 %v188
    %v650 = vunpack.c.l.b16 %v189
    %v651 = vunpack.c.h.b16 %v189
    %v652 = vunpack.c.l.b16 %v190
    %v653 = vunpack.c.h.b16 %v190
    %v654 = vunpack.c.l.b16 %v191
    %v655 = vunpack.c.h.b16 %v191
    %v656 = vunpack.c.l.b16 %v192
    %v657 = vunpack.c.h.b16 %v192
    %v658 = vunpack.c.l.b16 %v193
    %v659 = vunpack.c.h.b16 %v193
    %v660 = vunpack.c.l.b16 %v194
    %v661 = vunpack.c.h.b16 %v194
    %v662 = vunpack.c.l.b16 %v195
    %v663 = vunpack.c.h.b16 %v195
    %v664 = vunpack.c.l.b16 %v196
    %v665 = vunpack.c.h.b16 %v196
    %v666 = vunpack.c.l.b16 %v197
    %v667 = vunpack.c.h.b16 %v197
    %v668 = vunpack.c.l.b16 %v198
    %v669 = vunpack.c.h.b16 %v198
    %v670 = vunpack.c.l.b16 %v199
    %v671 = vunpack.c.h.b16 %v199
    %v672 = vunpack.c.l.b16 %v200
    %v673 = vunpack.c.h.b16 %v200
    %v674 = vunpack.c.l.b16 %v201
    %v675 = vunpack.c.h.b16 %v201
    %v676 = vunpack.c.l.b16 %v202
    %v677 = vunpack.c.h.b16 %v202
    %v678 = vunpack.c.l.b16 %v203
    %v679 = vunpack.c.h.b16 %v203
    %v680 = vunpack.c.l.b16 %v204
    %v681 = vunpack.c.h.b16 %v204
    %v682 = vunpack.c.l.b16 %v205
    %v683 = vunpack.c.h.b16 %v205
    %v684 = vunpack.c.l.b16 %v206
    %v685 = vunpack.c.h.b16 %v206
    %v686 = vunpack.c.l.b16 %v207
    %v687 = vunpack.c.h.b16 %v207
    %v688 = vunpack.c.l.b16 %v208
    %v689 = vunpack.c.h.b16 %v208
    %v690 = vunpack.c.l.b16 %v209
    %v691 = vunpack.c.h.b16 %v209
    %v692 = vunpack.c.l.b16 %v210
    %v693 = vunpack.c.h.b16 %v210
    %v694 = vunpack.c.l.b16 %v211
    %v695 = vunpack.c.h.b16 %v211
    %v696 = vunpack.c.l.b16 %v212
    %v697 = vunpack.c.h.b16 %v212
    %v698 = vunpack.c.l.b16 %v213
    %v699 = vunpack.c.h.b16 %v213
    %v700 = vunpack.c.l.b16 %v214
    %v701 = vunpack.c.h.b16 %v214
    %v702 = vunpack.c.l.b16 %v215
    %v703 = vunpack.c.h.b16 %v215
    %v704 = vunpack.c.l.b16 %v216
    %v705 = vunpack.c.h.b16 %v216
    %v706 = vunpack.c.l.b16 %v217
    %v707 = vunpack.c.h.b16 %v217
    %v708 = vunpack.c.l.b16 %v218
    %v709 = vunpack.c.h.b16 %v218
    %v710 = vunpack.c.l.b16 %v219
    %v711 = vunpack.c.h.b16 %v219
    %v712 = vunpack.c.l.b16 %v220
    %v713 = vunpack.c.h.b16 %v220
    %v714 = vunpack.c.l.b16 %v221
    %v715 = vunpack.c.h.b16 %v221
    %v716 = vunpack.c.l.b16 %v222
    %v717 = vunpack.c.h.b16 %v222
    %v718 = vunpack.c.l.b16 %v223
    %v719 = vunpack.c.h.b16 %v223
    %v720 = vunpack.c.l.b16 %v224
    %v721 = vunpack.c.h.b16 %v224
    %v722 = vunpack.c.l.b16 %v225
    %v723 = vunpack.c.h.b16 %v225
    %v724 = vunpack.c.l.b16 %v226
    %v725 = vunpack.c.h.b16 %v226
    %v726 = vunpack.c.l.b16 %v227
    %v727 = vunpack.c.h.b16 %v227
    %v728 = vunpack.c.l.b16 %v228
    %v729 = vunpack.c.h.b16 %v228
    %v730 = vunpack.c.l.b16 %v229
    %v731 = vunpack.c.h.b16 %v229
    %v732 = vunpack.c.l.b16 %v230
    %v733 = vunpack.c.h.b16 %v230
    %v734 = vunpack.c.l.b16 %v231
    %v735 = vunpack.c.h.b16 %v231
    %v736 = vunpack.c.l.b16 %v232
    %v737 = vunpack.c.h.b16 %v232
    %v738 = vunpack.c.l.b16 %v233
    %v739 = vunpack.c.h.b16 %v233
    %v740 = vunpack.c.l.b16 %v234
    %v741 = vunpack.c.h.b16 %v234
    %v742 = vunpack.c.l.b16 %v235
    %v743 = vunpack.c.h.b16 %v235
    %v744 = vunpack.c.l.b16 %v236
    %v745 = vunpack.c.h.b16 %v236
    %v746 = vunpack.c.l.b16 %v237
    %v747 = vunpack.c.h.b16 %v237
    %v748 = vunpack.c.l.b16 %v238
    %v749 = vunpack.c.h.b16 %v238
    %v750 = vunpack.c.l.b16 %v239
    %v751 = vunpack.c.h.b16 %v239
    %v752 = vunpack.c.l.b16 %v240
    %v753 = vunpack.c.h.b16 %v240
    %v754 = vunpack.c.l.b16 %v241
    %v755 = vunpack.c.h.b16 %v241
    %v756 = vunpack.c.l.b16 %v242
    %v757 = vunpack.c.h.b16 %v242
    %v758 = vunpack.c.l.b16 %v243
    %v759 = vunpack.c.h.b16 %v243
    %v760 = vunpack.c.l.b16 %v244
    %v761 = vunpack.c.h.b16 %v244
    %v762 = vunpack.c.l.b16 %v245
    %v763 = vunpack.c.h.b16 %v245
    %v764 = vunpack.c.l.b16 %v246
    %v765 = vunpack.c.h.b16 %v246
    %v766 = vunpack.c.l.b16 %v247
    %v767 = vunpack.c.h.b16 %v247
    %v768 = vunpack.c.l.b16 %v248
    %v769 = vunpack.c.h.b16 %v248
    %v770 = vunpack.c.l.b16 %v249
    %v771 = vunpack.c.h.b16 %v249
    %v772 = vunpack.c.l.b16 %v250
    %v773 = vunpack.c.h.b16 %v250
    %v774 = vunpack.c.l.b16 %v251
    %v775 = vunpack.c.h.b16 %v251
    %v776 = vunpack.c.l.b16 %v252
    %v777 = vunpack.c.h.b16 %v252
    %v778 = vunpack.c.l.b16 %v253
    %v779 = vunpack.c.h.b16 %v253
    %v780 = vunpack.c.l.b16 %v254
    %v781 = vunpack.c.h.b16 %v254
    %v782 = vunpack.c.l.b16 %v255
    %v783 = vunpack.c.h.b16 %v255
    %v784 = vunpack.c.l.b16 %v256
    %v785 = vunpack.c.h.b16 %v256
    %v786 = vunpack.c.l.b16 %v257
    %v787 = vunpack.c.h.b16 %v257
    %v788 = vunpack.c.l.b16 %v258
    %v789 = vunpack.c.h.b16 %v258
    %v790 = vunpack.c.l.b16 %v259
    %v791 = vunpack.c.h.b16 %v259
    %v792 = vunpack.c.l.b16 %v260
    %v793 = vunpack.c.h.b16 %v260
    %v794 = vunpack.c.l.b16 %v261
    %v795 = vunpack.c.h.b16 %v261
    %v796 = vunpack.c.l.b16 %v262
    %v797 = vunpack.c.h.b16 %v262
    %v798 = vunpack.c.l.b16 %v263
    %v799 = vunpack.c.h.b16 %v263
    %v800 = vunpack.c.l.b16 %v264
    %v801 = vunpack.c.h.b16 %v264
    %v802 = vunpack.c.l.b16 %v265
    %v803 = vunpack.c.h.b16 %v265
    %v804 = vunpack.c.l.b16 %v266
    %v805 = vunpack.c.h.b16 %v266
    %v806 = vunpack.c.l.b16 %v267
    %v807 = vunpack.c.h.b16 %v267
    %v808 = vunpack.c.l.b16 %v268
    %v809 = vunpack.c.h.b16 %v268
    %v810 = vunpack.c.l.b16 %v269
    %v811 = vunpack.c.h.b16 %v269
    %v812 = vunpack.c.l.b16 %v270
    %v813 = vunpack.c.h.b16 %v270
    %v814 = vunpack.c.l.b16 %v271
    %v815 = vunpack.c.h.b16 %v271
    %v816 = vunpack.c.l.b16 %v272
    %v817 = vunpack.c.h.b16 %v272
    %v818 = vunpack.c.l.b16 %v273
    %v819 = vunpack.c.h.b16 %v273
    %v820 = vunpack.c.l.b16 %v274
    %v821 = vunpack.c.h.b16 %v274
    %v822 = vunpack.c.l.b16 %v275
    %v823 = vunpack.c.h.b16 %v275
    %v824 = vunpack.c.l.b16 %v276
    %v825 = vunpack.c.h.b16 %v276
    %v826 = vunpack.c.l.b16 %v277
    %v827 = vunpack.c.h.b16 %v277
    %v828 = vunpack.c.l.b16 %v278
    %v829 = vunpack.c.h.b16 %v278
    %v830 = vunpack.c.l.b16 %v279
    %v831 = vunpack.c.h.b16 %v279
    %v832 = vunpack.c.l.b16 %v280
    %v833 = vunpack.c.h.b16 %v280
    %v834 = vunpack.c.l.b16 %v281
    %v835 = vunpack.c.h.b16 %v281
    %v836 = vunpack.c.l.b16 %v282
    %v837 = vunpack.c.h.b16 %v282
    %v838 = vunpack.c.l.b16 %v283
    %v839 = vunpack.c.h.b16 %v283
    %v840 = vunpack.c.l.b16 %v284
    %v841 = vunpack.c.h.b16 %v284
    %v842 = vunpack.c.l.b16 %v285
    %v843 = vunpack.c.h.b16 %v285
    %v844 = vunpack.c.l.b16 %v286
    %v845 = vunpack.c.h.b16 %v286
    %v846 = vunpack.c.l.b16 %v287
    %v847 = vunpack.c.h.b16 %v287
    %v848 = vunpack.c.l.b16 %v288
    %v849 = vunpack.c.h.b16 %v288
    %v850 = vunpack.c.l.b16 %v289
    %v851 = vunpack.c.h.b16 %v289
    %v852 = vunpack.c.l.b16 %v290
    %v853 = vunpack.c.h.b16 %v290
    %v854 = vunpack.c.l.b16 %v291
    %v855 = vunpack.c.h.b16 %v291
    %v856 = vunpack.c.l.b16 %v292
    %v857 = vunpack.c.h.b16 %v292
    %v858 = vunpack.c.l.b16 %v293
    %v859 = vunpack.c.h.b16 %v293
    %v860 = vunpack.c.l.b16 %v294
    %v861 = vunpack.c.h.b16 %v294
    %v862 = vunpack.c.l.b16 %v295
    %v863 = vunpack.c.h.b16 %v295
    %v864 = vunpack.c.l.b16 %v296
    %v865 = vunpack.c.h.b16 %v296
    %v866 = vunpack.c.l.b16 %v297
    %v867 = vunpack.c.h.b16 %v297
    %v868 = vunpack.c.l.b16 %v298
    %v869 = vunpack.c.h.b16 %v298
    %v870 = vunpack.c.l.b16 %v299
    %v871 = vunpack.c.h.b16 %v299
    %v872 = vunpack.c.l.b16 %v300
    %v873 = vunpack.c.h.b16 %v300
    %v874 = vunpack.c.l.b16 %v301
    %v875 = vunpack.c.h.b16 %v301
    %v876 = vunpack.c.l.b16 %v302
    %v877 = vunpack.c.h.b16 %v302
    %v878 = vunpack.c.l.b16 %v303
    %v879 = vunpack.c.h.b16 %v303
    %v880 = vunpack.c.l.b16 %v304
    %v881 = vunpack.c.h.b16 %v304
    %v882 = vunpack.c.l.b16 %v305
    %v883 = vunpack.c.h.b16 %v305
    %v884 = vunpack.c.l.b16 %v306
    %v885 = vunpack.c.h.b16 %v306
    %v886 = vunpack.c.l.b16 %v307
    %v887 = vunpack.c.h.b16 %v307
    %v888 = vunpack.c.l.b16 %v308
    %v889 = vunpack.c.h.b16 %v308
    %v890 = vunpack.c.l.b16 %v309
    %v891 = vunpack.c.h.b16 %v309
    %v892 = vunpack.c.l.b16 %v310
    %v893 = vunpack.c.h.b16 %v310
    %v894 = vunpack.c.l.b16 %v311
    %v895 = vunpack.c.h.b16 %v311
    %v896 = vunpack.c.l.b16 %v312
    %v897 = vunpack.c.h.b16 %v312
    %v898 = vunpack.c.l.b16 %v313
    %v899 = vunpack.c.h.b16 %v313
    %v900 = vunpack.c.l.b16 %v314
    %v901 = vunpack.c.h.b16 %v314
    %v902 = vunpack.c.l.b16 %v315
    %v903 = vunpack.c.h.b16 %v315
    %v904 = vunpack.c.l.b16 %v316
    %v905 = vunpack.c.h.b16 %v316
    %v906 = vunpack.c.l.b16 %v317
    %v907 = vunpack.c.h.b16 %v317
    %v908 = vunpack.c.l.b16 %v318
    %v909 = vunpack.c.h.b16 %v318
    %v910 = vunpack.c.l.b16 %v319
    %v911 = vunpack.c.h.b16 %v319
    %v912 = vunpack.c.l.b16 %v320
    %v913 = vunpack.c.h.b16 %v320
    %v914 = vunpack.c.l.b16 %v321
    %v915 = vunpack.c.h.b16 %v321
    %v916 = vunpack.c.l.b16 %v322
    %v917 = vunpack.c.h.b16 %v322
    %v918 = vunpack.c.l.b16 %v323
    %v919 = vunpack.c.h.b16 %v323
    %v920 = vunpack.c.l.b16 %v324
    %v921 = vunpack.c.h.b16 %v324
    %v922 = vunpack.c.l.b16 %v325
    %v923 = vunpack.c.h.b16 %v325
    %v924 = vunpack.c.l.b16 %v326
    %v925 = vunpack.c.h.b16 %v326
    %v926 = vunpack.c.l.b16 %v327
    %v927 = vunpack.c.h.b16 %v327
    %v928 = vunpack.c.l.b16 %v328
    %v929 = vunpack.c.h.b16 %v328
    %v930 = vunpack.c.l.b16 %v329
    %v931 = vunpack.c.h.b16 %v329
    %v932 = vunpack.c.l.b16 %v330
    %v933 = vunpack.c.h.b16 %v330
    %v934 = vunpack.c.l.b16 %v331
    %v935 = vunpack.c.h.b16 %v331
    %v936 = vunpack.c.l.b16 %v332
    %v937 = vunpack.c.h.b16 %v332
    %v938 = vunpack.c.l.b16 %v333
    %v939 = vunpack.c.h.b16 %v333
    %v940 = vunpack.c.l.b16 %v334
    %v941 = vunpack.c.h.b16 %v334
    %v942 = vunpack.c.l.b16 %v335
    %v943 = vunpack.c.h.b16 %v335
    %v944 = vunpack.c.l.b16 %v336
    %v945 = vunpack.c.h.b16 %v336
    %v946 = vunpack.c.l.b16 %v337
    %v947 = vunpack.c.h.b16 %v337
    %v948 = vunpack.c.l.b16 %v338
    %v949 = vunpack.c.h.b16 %v338
    %v950 = vunpack.c.l.b16 %v339
    %v951 = vunpack.c.h.b16 %v339
    %v952 = vpack.c.b16 %v564, %v560
    %v953 = vpack.c.b16 %v565, %v561
    %v954 = vpack.c.b16 %v566, %v562
    %v955 = vpack.c.b16 %v567, %v563
    %v956 = vpack.c.b16 %v572, %v568
    %v957 = vpack.c.b16 %v573, %v569
    %v958 = vpack.c.b16 %v574, %v570
    %v959 = vpack.c.b16 %v575, %v571
    %v960 = vpack.c.b16 %v580, %v576
    %v961 = vpack.c.b16 %v581, %v577
    %v962 = vpack.c.b16 %v582, %v578
    %v963 = vpack.c.b16 %v583, %v579
    %v964 = vpack.c.b16 %v588, %v584
    %v965 = vpack.c.b16 %v589, %v585
    %v966 = vpack.c.b16 %v590, %v586
    %v967 = vpack.c.b16 %v591, %v587
    %v968 = vpack.c.b16 %v596, %v592
    %v969 = vpack.c.b16 %v597, %v593
    %v970 = vpack.c.b16 %v598, %v594
    %v971 = vpack.c.b16 %v599, %v595
    %v972 = vpack.c.b16 %v604, %v600
    %v973 = vpack.c.b16 %v605, %v601
    %v974 = vpack.c.b16 %v606, %v602
    %v975 = vpack.c.b16 %v607, %v603
    %v976 = vpack.c.b16 %v612, %v608
    %v977 = vpack.c.b16 %v613, %v609
    %v978 = vpack.c.b16 %v614, %v610
    %v979 = vpack.c.b16 %v615, %v611
    %v980 = vpack.c.b16 %v620, %v616
    %v981 = vpack.c.b16 %v621, %v617
    %v982 = vpack.c.b16 %v622, %v618
    %v983 = vpack.c.b16 %v623, %v619
    %v984 = vpack.c.b16 %v628, %v624
    %v985 = vpack.c.b16 %v629, %v625
    %v986 = vpack.c.b16 %v630, %v626
    %v987 = vpack.c.b16 %v631, %v627
    %v988 = vpack.c.b16 %v636, %v632
    %v989 = vpack.c.b16 %v637, %v633
    %v990 = vpack.c.b16 %v638, %v634
    %v991 = vpack.c.b16 %v639, %v635
    %v992 = vpack.c.b16 %v644, %v640
    %v993 = vpack.c.b16 %v645, %v641
    %v994 = vpack.c.b16 %v646, %v642
    %v995 = vpack.c.b16 %v647, %v643
    %v996 = vpack.c.b16 %v652, %v648
    %v997 = vpack.c.b16 %v653, %v649
    %v998 = vpack.c.b16 %v654, %v650
    %v999 = vpack.c.b16 %v655, %v651
    %v1000 = vpack.c.b16 %v660, %v656
    %v1001 = vpack.c.b16 %v661, %v657
    %v1002 = vpack.c.b16 %v662, %v658
    %v1003 = vpack.c.b16 %v663, %v659
    %v1004 = vpack.c.b16 %v668, %v664
    %v1005 = vpack.c.b16 %v669, %v665
    %v1006 = vpack.c.b16 %v670, %v666
    %v1007 = vpack.c.b16 %v671, %v667
    %v1008 = vpack.c.b16 %v676, %v672
    %v1009 = vpack.c.b16 %v677, %v673
    %v1010 = vpack.c.b16 %v678, %v674
    %v1011 = vpack.c.b16 %v679, %v675
    %v1012 = vpack.c.b16 %v684, %v680
    %v1013 = vpack.c.b16 %v685, %v681
    %v1014 = vpack.c.b16 %v686, %v682
    %v1015 = vpack.c.b16 %v687, %v683
    %v1016 = vpack.c.b16 %v692, %v688
    %v1017 = vpack.c.b16 %v693, %v689
    %v1018 = vpack.c.b16 %v694, %v690
    %v1019 = vpack.c.b16 %v695, %v691
    %v1020 = vpack.c.b16 %v700, %v696
    %v1021 = vpack.c.b16 %v701, %v697
    %v1022 = vpack.c.b16 %v702, %v698
    %v1023 = vpack.c.b16 %v703, %v699
    %v1024 = vpack.c.b16 %v708, %v704
    %v1025 = vpack.c.b16 %v709, %v705
    %v1026 = vpack.c.b16 %v710, %v706
    %v1027 = vpack.c.b16 %v711, %v707
    %v1028 = vpack.c.b16 %v716, %v712
    %v1029 = vpack.c.b16 %v717, %v713
    %v1030 = vpack.c.b16 %v718, %v714
    %v1031 = vpack.c.b16 %v719, %v715
    %v1032 = vpack.c.b16 %v724, %v720
    %v1033 = vpack.c.b16 %v725, %v721
    %v1034 = vpack.c.b16 %v726, %v722
    %v1035 = vpack.c.b16 %v727, %v723
    %v1036 = vpack.c.b16 %v732, %v728
    %v1037 = vpack.c.b16 %v733, %v729
    %v1038 = vpack.c.b16 %v734, %v730
    %v1039 = vpack.c.b16 %v735, %v731
    %v1040 = vpack.c.b16 %v740, %v736
    %v1041 = vpack.c.b16 %v741, %v737
    %v1042 = vpack.c.b16 %v742, %v738
    %v1043 = vpack.c.b16 %v743, %v739
    %v1044 = vpack.c.b16 %v748, %v744
    %v1045 = vpack.c.b16 %v749, %v745
    %v1046 = vpack.c.b16 %v750, %v746
    %v1047 = vpack.c.b16 %v751, %v747
    %v1048 = vpack.c.b16 %v756, %v752
    %v1049 = vpack.c.b16 %v757, %v753
    %v1050 = vpack.c.b16 %v758, %v754
    %v1051 = vpack.c.b16 %v759, %v755
    %v1052 = vpack.c.b16 %v764, %v760
    %v1053 = vpack.c.b16 %v765, %v761
    %v1054 = vpack.c.b16 %v766, %v762
    %v1055 = vpack.c.b16 %v767, %v763
    %v1056 = vpack.c.b16 %v772, %v768
    %v1057 = vpack.c.b16 %v773, %v769
    %v1058 = vpack.c.b16 %v774, %v770
    %v1059 = vpack.c.b16 %v775, %v771
    %v1060 = vpack.c.b16 %v780, %v776
    %v1061 = vpack.c.b16 %v781, %v777
    %v1062 = vpack.c.b16 %v782, %v778
    %v1063 = vpack.c.b16 %v783, %v779
    %v1064 = vpack.c.b16 %v788, %v784
    %v1065 = vpack.c.b16 %v789, %v785
    %v1066 = vpack.c.b16 %v790, %v786
    %v1067 = vpack.c.b16 %v791, %v787
    %v1068 = vpack.c.b16 %v796, %v792
    %v1069 = vpack.c.b16 %v797, %v793
    %v1070 = vpack.c.b16 %v798, %v794
    %v1071 = vpack.c.b16 %v799, %v795
    %v1072 = vpack.c.b16 %v804, %v800
    %v1073 = vpack.c.b16 %v805, %v801
    %v1074 = vpack.c.b16 %v806, %v802
    %v1075 = vpack.c.b16 %v807, %v803
    %v1076 = vpack.c.b16 %v812, %v808
    %v1077 = vpack.c.b16 %v813, %v809
    %v1078 = vpack.c.b16 %v814, %v810
    %v1079 = vpack.c.b16 %v815, %v811
    %v1080 = vpack.c.b16 %v820, %v816
    %v1081 = vpack.c.b16 %v821, %v817
    %v1082 = vpack.c.b16 %v822, %v818
    %v1083 = vpack.c.b16 %v823, %v819
    %v1084 = vpack.c.b16 %v828, %v824
    %v1085 = vpack.c.b16 %v829, %v825
    %v1086 = vpack.c.b16 %v830, %v826
    %v1087 = vpack.c.b16 %v831, %v827
    %v1088 = vpack.c.b16 %v836, %v832
    %v1089 = vpack.c.b16 %v837, %v833
    %v1090 = vpack.c.b16 %v838, %v834
    %v1091 = vpack.c.b16 %v839, %v835
    %v1092 = vpack.c.b16 %v844, %v840
    %v1093 = vpack.c.b16 %v845, %v841
    %v1094 = vpack.c.b16 %v846, %v842
    %v1095 = vpack.c.b16 %v847, %v843
    %v1096 = vpack.c.b16 %v852, %v848
    %v1097 = vpack.c.b16 %v853, %v849
    %v1098 = vpack.c.b16 %v854, %v850
    %v1099 = vpack.c.b16 %v855, %v851
    %v1100 = vpack.c.b16 %v860, %v856
    %v1101 = vpack.c.b16 %v861, %v857
    %v1102 = vpack.c.b16 %v862, %v858
    %v1103 = vpack.c.b16 %v863, %v859
    %v1104 = vpack.c.b16 %v868, %v864
    %v1105 = vpack.c.b16 %v869, %v865
    %v1106 = vpack.c.b16 %v870, %v866
    %v1107 = vpack.c.b16 %v871, %v867
    %v1108 = vpack.c.b16 %v876, %v872
    %v1109 = vpack.c.b16 %v877, %v873
    %v1110 = vpack.c.b16 %v878, %v874
    %v1111 = vpack.c.b16 %v879, %v875
    %v1112 = vpack.c.b16 %v884, %v880
    %v1113 = vpack.c.b16 %v885, %v881
    %v1114 = vpack.c.b16 %v886, %v882
    %v1115 = vpack.c.b16 %v887, %v883
    %v1116 = vpack.c.b16 %v892, %v888
    %v1117 = vpack.c.b16 %v893, %v889
    %v1118 = vpack.c.b16 %v894, %v890
    %v1119 = vpack.c.b16 %v895, %v891
    %v1120 = vpack.c.b16 %v900, %v896
    %v1121 = vpack.c.b16 %v901, %v897
    %v1122 = vpack.c.b16 %v902, %v898
    %v1123 = vpack.c.b16 %v903, %v899
    %v1124 = vpack.c.b16 %v908, %v904
    %v1125 = vpack.c.b16 %v909, %v905
    %v1126 = vpack.c.b16 %v910, %v906
    %v1127 = vpack.c.b16 %v911, %v907
    %v1128 = vpack.c.b16 %v916, %v912
    %v1129 = vpack.c.b16 %v917, %v913
    %v1130 = vpack.c.b16 %v918, %v914
    %v1131 = vpack.c.b16 %v919, %v915
    %v1132 = vpack.c.b16 %v924, %v920
    %v1133 = vpack.c.b16 %v925, %v921
    %v1134 = vpack.c.b16 %v926, %v922
    %v1135 = vpack.c.b16 %v927, %v923
    %v1136 = vpack.c.b16 %v932, %v928
    %v1137 = vpack.c.b16 %v933, %v929
    %v1138 = vpack.c.b16 %v934, %v930
    %v1139 = vpack.c.b16 %v935, %v931
    %v1140 = vpack.c.b16 %v940, %v936
    %v1141 = vpack.c.b16 %v941, %v937
    %v1142 = vpack.c.b16 %v942, %v938
    %v1143 = vpack.c.b16 %v943, %v939
    %v1144 = vpack.c.b16 %v948, %v944
    %v1145 = vpack.c.b16 %v949, %v945
    %v1146 = vpack.c.b16 %v950, %v946
    %v1147 = vpack.c.b16 %v951, %v947
    %vm1344 = vcmask 130048
    %v1346 = vsel %vm1344, %v357, 0
    %1348 = vmatpush.bf16.msra.mxu0 %v980
    %1349 = vmatpush.bf16.msra.mxu0 %v976
    %1350 = vmatpush.bf16.msra.mxu0 %v972
    %1351 = vmatpush.bf16.msra.mxu0 %v968
    %1352 = vmatpush.bf16.msra.mxu0 %v964
    %1353 = vmatpush.bf16.msra.mxu0 %v960
    %1354 = vmatpush.bf16.msra.mxu0 %v956
    %1355 = vmatpush.bf16.msra.mxu0 %v952
    %1356 = vmatmul.bf16.gmra.mxu0 %v351
    %v1357 = vpop.f32.mrf.mxu0
    %v1358 = vadd.f32 0.0, %v1357
    %v1359 = vpop.f32.mrf.mxu0
    %1360 = vdwg.mxu0
    %1361 = vmatpush.bf16.msra.mxu0 %v1012
    %1362 = vmatpush.bf16.msra.mxu0 %v1008
    %1363 = vmatpush.bf16.msra.mxu0 %v1004
    %1364 = vmatpush.bf16.msra.mxu0 %v1000
    %1365 = vmatpush.bf16.msra.mxu0 %v996
    %1366 = vmatpush.bf16.msra.mxu0 %v992
    %1367 = vmatpush.bf16.msra.mxu0 %v988
    %1368 = vmatpush.bf16.msra.mxu0 %v984
    %1369 = vmatmul.bf16.gmra.mxu0 %v352
    %v1370 = vpop.f32.mrf.mxu0
    %v1371 = vadd.f32 %v1358, %v1370
    %v1372 = vpop.f32.mrf.mxu0
    %1373 = vdwg.mxu0
    %1374 = vmatpush.bf16.msra.mxu0 %v1044
    %1375 = vmatpush.bf16.msra.mxu0 %v1040
    %1376 = vmatpush.bf16.msra.mxu0 %v1036
    %1377 = vmatpush.bf16.msra.mxu0 %v1032
    %1378 = vmatpush.bf16.msra.mxu0 %v1028
    %1379 = vmatpush.bf16.msra.mxu0 %v1024
    %1380 = vmatpush.bf16.msra.mxu0 %v1020
    %1381 = vmatpush.bf16.msra.mxu0 %v1016
    %1382 = vmatmul.bf16.gmra.mxu0 %v353
    %v1383 = vpop.f32.mrf.mxu0
    %v1384 = vadd.f32 %v1371, %v1383
    %v1385 = vpop.f32.mrf.mxu0
    %1386 = vdwg.mxu0
    %1387 = vmatpush.bf16.msra.mxu0 %v1076
    %1388 = vmatpush.bf16.msra.mxu0 %v1072
    %1389 = vmatpush.bf16.msra.mxu0 %v1068
    %1390 = vmatpush.bf16.msra.mxu0 %v1064
    %1391 = vmatpush.bf16.msra.mxu0 %v1060
    %1392 = vmatpush.bf16.msra.mxu0 %v1056
    %1393 = vmatpush.bf16.msra.mxu0 %v1052
    %1394 = vmatpush.bf16.msra.mxu0 %v1048
    %1395 = vmatmul.bf16.gmra.mxu0 %v354
    %v1396 = vpop.f32.mrf.mxu0
    %v1397 = vadd.f32 %v1384, %v1396
    %v1398 = vpop.f32.mrf.mxu0
    %1399 = vdwg.mxu0
    %1400 = vmatpush.bf16.msra.mxu0 %v1108
    %1401 = vmatpush.bf16.msra.mxu0 %v1104
    %1402 = vmatpush.bf16.msra.mxu0 %v1100
    %1403 = vmatpush.bf16.msra.mxu0 %v1096
    %1404 = vmatpush.bf16.msra.mxu0 %v1092
    %1405 = vmatpush.bf16.msra.mxu0 %v1088
    %1406 = vmatpush.bf16.msra.mxu0 %v1084
    %1407 = vmatpush.bf16.msra.mxu0 %v1080
    %1408 = vmatmul.bf16.gmra.mxu0 %v355
    %v1409 = vpop.f32.mrf.mxu0
    %v1410 = vadd.f32 %v1397, %v1409
    %v1411 = vpop.f32.mrf.mxu0
    %1412 = vdwg.mxu0
    %1413 = vmatpush.bf16.msra.mxu0 %v1140
    %1414 = vmatpush.bf16.msra.mxu0 %v1136
    %1415 = vmatpush.bf16.msra.mxu0 %v1132
    %1416 = vmatpush.bf16.msra.mxu0 %v1128
    %1417 = vmatpush.bf16.msra.mxu0 %v1124
    %1418 = vmatpush.bf16.msra.mxu0 %v1120
    %1419 = vmatpush.bf16.msra.mxu0 %v1116
    %1420 = vmatpush.bf16.msra.mxu0 %v1112
    %1421 = vmatmul.bf16.gmra.mxu0 %v356
    %v1422 = vpop.f32.mrf.mxu0
    %v1423 = vadd.f32 %v1410, %v1422
    %v1424 = vpop.f32.mrf.mxu0
    %1425 = vdwg.mxu0
    %1426 = vmatpush.bf16.msra.mxu0 0
    %1427 = vmatpush.bf16.msra.mxu0 0
    %1428 = vmatpush.bf16.msra.mxu0 0
    %1429 = vmatpush.bf16.msra.mxu0 0
    %1430 = vmatpush.bf16.msra.mxu0 0
    %1431 = vmatpush.bf16.msra.mxu0 0
    %1432 = vmatpush.bf16.msra.mxu0 0
    %1433 = vmatpush.bf16.msra.mxu0 %v1144
    %1434 = vmatmul.bf16.gmra.mxu0 %v1346
    %v1435 = vpop.f32.mrf.mxu0
    %v1436 = vadd.f32 %v1423, %v1435
    %v1437 = vpop.f32.mrf.mxu0
    %1438 = vdwg.mxu0
    %1439 = vmatpush.bf16.msra.mxu0 %v981
    %1440 = vmatpush.bf16.msra.mxu0 %v977
    %1441 = vmatpush.bf16.msra.mxu0 %v973
    %1442 = vmatpush.bf16.msra.mxu0 %v969
    %1443 = vmatpush.bf16.msra.mxu0 %v965
    %1444 = vmatpush.bf16.msra.mxu0 %v961
    %1445 = vmatpush.bf16.msra.mxu0 %v957
    %1446 = vmatpush.bf16.msra.mxu0 %v953
    %1447 = vmatmul.bf16.gmra.mxu0 %v351
    %v1448 = vpop.f32.mrf.mxu0
    %v1449 = vadd.f32 0.0, %v1448
    %v1450 = vpop.f32.mrf.mxu0
    %1451 = vdwg.mxu0
    %1452 = vmatpush.bf16.msra.mxu0 %v1013
    %1453 = vmatpush.bf16.msra.mxu0 %v1009
    %1454 = vmatpush.bf16.msra.mxu0 %v1005
    %1455 = vmatpush.bf16.msra.mxu0 %v1001
    %1456 = vmatpush.bf16.msra.mxu0 %v997
    %1457 = vmatpush.bf16.msra.mxu0 %v993
    %1458 = vmatpush.bf16.msra.mxu0 %v989
    %1459 = vmatpush.bf16.msra.mxu0 %v985
    %1460 = vmatmul.bf16.gmra.mxu0 %v352
    %v1461 = vpop.f32.mrf.mxu0
    %v1462 = vadd.f32 %v1449, %v1461
    %v1463 = vpop.f32.mrf.mxu0
    %1464 = vdwg.mxu0
    %1465 = vmatpush.bf16.msra.mxu0 %v1045
    %1466 = vmatpush.bf16.msra.mxu0 %v1041
    %1467 = vmatpush.bf16.msra.mxu0 %v1037
    %1468 = vmatpush.bf16.msra.mxu0 %v1033
    %1469 = vmatpush.bf16.msra.mxu0 %v1029
    %1470 = vmatpush.bf16.msra.mxu0 %v1025
    %1471 = vmatpush.bf16.msra.mxu0 %v1021
    %1472 = vmatpush.bf16.msra.mxu0 %v1017
    %1473 = vmatmul.bf16.gmra.mxu0 %v353
    %v1474 = vpop.f32.mrf.mxu0
    %v1475 = vadd.f32 %v1462, %v1474
    %v1476 = vpop.f32.mrf.mxu0
    %1477 = vdwg.mxu0
    %1478 = vmatpush.bf16.msra.mxu0 %v1077
    %1479 = vmatpush.bf16.msra.mxu0 %v1073
    %1480 = vmatpush.bf16.msra.mxu0 %v1069
    %1481 = vmatpush.bf16.msra.mxu0 %v1065
    %1482 = vmatpush.bf16.msra.mxu0 %v1061
    %1483 = vmatpush.bf16.msra.mxu0 %v1057
    %1484 = vmatpush.bf16.msra.mxu0 %v1053
    %1485 = vmatpush.bf16.msra.mxu0 %v1049
    %1486 = vmatmul.bf16.gmra.mxu0 %v354
    %v1487 = vpop.f32.mrf.mxu0
    %v1488 = vadd.f32 %v1475, %v1487
    %v1489 = vpop.f32.mrf.mxu0
    %1490 = vdwg.mxu0
    %1491 = vmatpush.bf16.msra.mxu0 %v1109
    %1492 = vmatpush.bf16.msra.mxu0 %v1105
    %1493 = vmatpush.bf16.msra.mxu0 %v1101
    %1494 = vmatpush.bf16.msra.mxu0 %v1097
    %1495 = vmatpush.bf16.msra.mxu0 %v1093
    %1496 = vmatpush.bf16.msra.mxu0 %v1089
    %1497 = vmatpush.bf16.msra.mxu0 %v1085
    %1498 = vmatpush.bf16.msra.mxu0 %v1081
    %1499 = vmatmul.bf16.gmra.mxu0 %v355
    %v1500 = vpop.f32.mrf.mxu0
    %v1501 = vadd.f32 %v1488, %v1500
    %v1502 = vpop.f32.mrf.mxu0
    %1503 = vdwg.mxu0
    %1504 = vmatpush.bf16.msra.mxu0 %v1141
    %1505 = vmatpush.bf16.msra.mxu0 %v1137
    %1506 = vmatpush.bf16.msra.mxu0 %v1133
    %1507 = vmatpush.bf16.msra.mxu0 %v1129
    %1508 = vmatpush.bf16.msra.mxu0 %v1125
    %1509 = vmatpush.bf16.msra.mxu0 %v1121
    %1510 = vmatpush.bf16.msra.mxu0 %v1117
    %1511 = vmatpush.bf16.msra.mxu0 %v1113
    %1512 = vmatmul.bf16.gmra.mxu0 %v356
    %v1513 = vpop.f32.mrf.mxu0
    %v1514 = vadd.f32 %v1501, %v1513
    %v1515 = vpop.f32.mrf.mxu0
    %1516 = vdwg.mxu0
    %1517 = vmatpush.bf16.msra.mxu0 0
    %1518 = vmatpush.bf16.msra.mxu0 0
    %1519 = vmatpush.bf16.msra.mxu0 0
    %1520 = vmatpush.bf16.msra.mxu0 0
    %1521 = vmatpush.bf16.msra.mxu0 0
    %1522 = vmatpush.bf16.msra.mxu0 0
    %1523 = vmatpush.bf16.msra.mxu0 0
    %1524 = vmatpush.bf16.msra.mxu0 %v1145
    %1525 = vmatmul.bf16.gmra.mxu0 %v1346
    %v1526 = vpop.f32.mrf.mxu0
    %v1527 = vadd.f32 %v1514, %v1526
    %v1528 = vpop.f32.mrf.mxu0
    %1529 = vdwg.mxu0
    %1530 = vmatpush.bf16.msra.mxu0 %v982
    %1531 = vmatpush.bf16.msra.mxu0 %v978
    %1532 = vmatpush.bf16.msra.mxu0 %v974
    %1533 = vmatpush.bf16.msra.mxu0 %v970
    %1534 = vmatpush.bf16.msra.mxu0 %v966
    %1535 = vmatpush.bf16.msra.mxu0 %v962
    %1536 = vmatpush.bf16.msra.mxu0 %v958
    %1537 = vmatpush.bf16.msra.mxu0 %v954
    %1538 = vmatmul.bf16.gmra.mxu0 %v351
    %v1539 = vpop.f32.mrf.mxu0
    %v1540 = vadd.f32 0.0, %v1539
    %v1541 = vpop.f32.mrf.mxu0
    %1542 = vdwg.mxu0
    %1543 = vmatpush.bf16.msra.mxu0 %v1014
    %1544 = vmatpush.bf16.msra.mxu0 %v1010
    %1545 = vmatpush.bf16.msra.mxu0 %v1006
    %1546 = vmatpush.bf16.msra.mxu0 %v1002
    %1547 = vmatpush.bf16.msra.mxu0 %v998
    %1548 = vmatpush.bf16.msra.mxu0 %v994
    %1549 = vmatpush.bf16.msra.mxu0 %v990
    %1550 = vmatpush.bf16.msra.mxu0 %v986
    %1551 = vmatmul.bf16.gmra.mxu0 %v352
    %v1552 = vpop.f32.mrf.mxu0
    %v1553 = vadd.f32 %v1540, %v1552
    %v1554 = vpop.f32.mrf.mxu0
    %1555 = vdwg.mxu0
    %1556 = vmatpush.bf16.msra.mxu0 %v1046
    %1557 = vmatpush.bf16.msra.mxu0 %v1042
    %1558 = vmatpush.bf16.msra.mxu0 %v1038
    %1559 = vmatpush.bf16.msra.mxu0 %v1034
    %1560 = vmatpush.bf16.msra.mxu0 %v1030
    %1561 = vmatpush.bf16.msra.mxu0 %v1026
    %1562 = vmatpush.bf16.msra.mxu0 %v1022
    %1563 = vmatpush.bf16.msra.mxu0 %v1018
    %1564 = vmatmul.bf16.gmra.mxu0 %v353
    %v1565 = vpop.f32.mrf.mxu0
    %v1566 = vadd.f32 %v1553, %v1565
    %v1567 = vpop.f32.mrf.mxu0
    %1568 = vdwg.mxu0
    %1569 = vmatpush.bf16.msra.mxu0 %v1078
    %1570 = vmatpush.bf16.msra.mxu0 %v1074
    %1571 = vmatpush.bf16.msra.mxu0 %v1070
    %1572 = vmatpush.bf16.msra.mxu0 %v1066
    %1573 = vmatpush.bf16.msra.mxu0 %v1062
    %1574 = vmatpush.bf16.msra.mxu0 %v1058
    %1575 = vmatpush.bf16.msra.mxu0 %v1054
    %1576 = vmatpush.bf16.msra.mxu0 %v1050
    %1577 = vmatmul.bf16.gmra.mxu0 %v354
    %v1578 = vpop.f32.mrf.mxu0
    %v1579 = vadd.f32 %v1566, %v1578
    %v1580 = vpop.f32.mrf.mxu0
    %1581 = vdwg.mxu0
    %1582 = vmatpush.bf16.msra.mxu0 %v1110
    %1583 = vmatpush.bf16.msra.mxu0 %v1106
    %1584 = vmatpush.bf16.msra.mxu0 %v1102
    %1585 = vmatpush.bf16.msra.mxu0 %v1098
    %1586 = vmatpush.bf16.msra.mxu0 %v1094
    %1587 = vmatpush.bf16.msra.mxu0 %v1090
    %1588 = vmatpush.bf16.msra.mxu0 %v1086
    %1589 = vmatpush.bf16.msra.mxu0 %v1082
    %1590 = vmatmul.bf16.gmra.mxu0 %v355
    %v1591 = vpop.f32.mrf.mxu0
    %v1592 = vadd.f32 %v1579, %v1591
    %v1593 = vpop.f32.mrf.mxu0
    %1594 = vdwg.mxu0
    %1595 = vmatpush.bf16.msra.mxu0 %v1142
    %1596 = vmatpush.bf16.msra.mxu0 %v1138
    %1597 = vmatpush.bf16.msra.mxu0 %v1134
    %1598 = vmatpush.bf16.msra.mxu0 %v1130
    %1599 = vmatpush.bf16.msra.mxu0 %v1126
    %1600 = vmatpush.bf16.msra.mxu0 %v1122
    %1601 = vmatpush.bf16.msra.mxu0 %v1118
    %1602 = vmatpush.bf16.msra.mxu0 %v1114
    %1603 = vmatmul.bf16.gmra.mxu0 %v356
    %v1604 = vpop.f32.mrf.mxu0
    %v1605 = vadd.f32 %v1592, %v1604
    %v1606 = vpop.f32.mrf.mxu0
    %1607 = vdwg.mxu0
    %1608 = vmatpush.bf16.msra.mxu0 0
    %1609 = vmatpush.bf16.msra.mxu0 0
    %1610 = vmatpush.bf16.msra.mxu0 0
    %1611 = vmatpush.bf16.msra.mxu0 0
    %1612 = vmatpush.bf16.msra.mxu0 0
    %1613 = vmatpush.bf16.msra.mxu0 0
    %1614 = vmatpush.bf16.msra.mxu0 0
    %1615 = vmatpush.bf16.msra.mxu0 %v1146
    %1616 = vmatmul.bf16.gmra.mxu0 %v1346
    %v1617 = vpop.f32.mrf.mxu0
    %v1618 = vadd.f32 %v1605, %v1617
    %v1619 = vpop.f32.mrf.mxu0
    %1620 = vdwg.mxu0
    %1621 = vmatpush.bf16.msra.mxu0 %v983
    %1622 = vmatpush.bf16.msra.mxu0 %v979
    %1623 = vmatpush.bf16.msra.mxu0 %v975
    %1624 = vmatpush.bf16.msra.mxu0 %v971
    %1625 = vmatpush.bf16.msra.mxu0 %v967
    %1626 = vmatpush.bf16.msra.mxu0 %v963
    %1627 = vmatpush.bf16.msra.mxu0 %v959
    %1628 = vmatpush.bf16.msra.mxu0 %v955
    %1629 = vmatmul.bf16.gmra.mxu0 %v351
    %v1630 = vpop.f32.mrf.mxu0
    %v1631 = vadd.f32 0.0, %v1630
    %v1632 = vpop.f32.mrf.mxu0
    %1633 = vdwg.mxu0
    %1634 = vmatpush.bf16.msra.mxu0 %v1015
    %1635 = vmatpush.bf16.msra.mxu0 %v1011
    %1636 = vmatpush.bf16.msra.mxu0 %v1007
    %1637 = vmatpush.bf16.msra.mxu0 %v1003
    %1638 = vmatpush.bf16.msra.mxu0 %v999
    %1639 = vmatpush.bf16.msra.mxu0 %v995
    %1640 = vmatpush.bf16.msra.mxu0 %v991
    %1641 = vmatpush.bf16.msra.mxu0 %v987
    %1642 = vmatmul.bf16.gmra.mxu0 %v352
    %v1643 = vpop.f32.mrf.mxu0
    %v1644 = vadd.f32 %v1631, %v1643
    %v1645 = vpop.f32.mrf.mxu0
    %1646 = vdwg.mxu0
    %1647 = vmatpush.bf16.msra.mxu0 %v1047
    %1648 = vmatpush.bf16.msra.mxu0 %v1043
    %1649 = vmatpush.bf16.msra.mxu0 %v1039
    %1650 = vmatpush.bf16.msra.mxu0 %v1035
    %1651 = vmatpush.bf16.msra.mxu0 %v1031
    %1652 = vmatpush.bf16.msra.mxu0 %v1027
    %1653 = vmatpush.bf16.msra.mxu0 %v1023
    %1654 = vmatpush.bf16.msra.mxu0 %v1019
    %1655 = vmatmul.bf16.gmra.mxu0 %v353
    %v1656 = vpop.f32.mrf.mxu0
    %v1657 = vadd.f32 %v1644, %v1656
    %v1658 = vpop.f32.mrf.mxu0
    %1659 = vdwg.mxu0
    %1660 = vmatpush.bf16.msra.mxu0 %v1079
    %1661 = vmatpush.bf16.msra.mxu0 %v1075
    %1662 = vmatpush.bf16.msra.mxu0 %v1071
    %1663 = vmatpush.bf16.msra.mxu0 %v1067
    %1664 = vmatpush.bf16.msra.mxu0 %v1063
    %1665 = vmatpush.bf16.msra.mxu0 %v1059
    %1666 = vmatpush.bf16.msra.mxu0 %v1055
    %1667 = vmatpush.bf16.msra.mxu0 %v1051
    %1668 = vmatmul.bf16.gmra.mxu0 %v354
    %v1669 = vpop.f32.mrf.mxu0
    %v1670 = vadd.f32 %v1657, %v1669
    %v1671 = vpop.f32.mrf.mxu0
    %1672 = vdwg.mxu0
    %1673 = vmatpush.bf16.msra.mxu0 %v1111
    %1674 = vmatpush.bf16.msra.mxu0 %v1107
    %1675 = vmatpush.bf16.msra.mxu0 %v1103
    %1676 = vmatpush.bf16.msra.mxu0 %v1099
    %1677 = vmatpush.bf16.msra.mxu0 %v1095
    %1678 = vmatpush.bf16.msra.mxu0 %v1091
    %1679 = vmatpush.bf16.msra.mxu0 %v1087
    %1680 = vmatpush.bf16.msra.mxu0 %v1083
    %1681 = vmatmul.bf16.gmra.mxu0 %v355
    %v1682 = vpop.f32.mrf.mxu0
    %v1683 = vadd.f32 %v1670, %v1682
    %v1684 = vpop.f32.mrf.mxu0
    %1685 = vdwg.mxu0
    %1686 = vmatpush.bf16.msra.mxu0 %v1143
    %1687 = vmatpush.bf16.msra.mxu0 %v1139
    %1688 = vmatpush.bf16.msra.mxu0 %v1135
    %1689 = vmatpush.bf16.msra.mxu0 %v1131
    %1690 = vmatpush.bf16.msra.mxu0 %v1127
    %1691 = vmatpush.bf16.msra.mxu0 %v1123
    %1692 = vmatpush.bf16.msra.mxu0 %v1119
    %1693 = vmatpush.bf16.msra.mxu0 %v1115
    %1694 = vmatmul.bf16.gmra.mxu0 %v356
    %v1695 = vpop.f32.mrf.mxu0
    %v1696 = vadd.f32 %v1683, %v1695
    %v1697 = vpop.f32.mrf.mxu0
    %1698 = vdwg.mxu0
    %1699 = vmatpush.bf16.msra.mxu0 0
    %1700 = vmatpush.bf16.msra.mxu0 0
    %1701 = vmatpush.bf16.msra.mxu0 0
    %1702 = vmatpush.bf16.msra.mxu0 0
    %1703 = vmatpush.bf16.msra.mxu0 0
    %1704 = vmatpush.bf16.msra.mxu0 0
    %1705 = vmatpush.bf16.msra.mxu0 0
    %1706 = vmatpush.bf16.msra.mxu0 %v1147
    %1707 = vmatmul.bf16.gmra.mxu0 %v1346
    %v1708 = vpop.f32.mrf.mxu0
    %v1709 = vadd.f32 %v1696, %v1708
    %v1710 = vpop.f32.mrf.mxu0
    %1711 = vdwg.mxu0
    %v1712 = vld [vmem:[#allocation7] sm:$0xf]
    %v1714 = vperm.slane %v1712, 0
    %v1715 = vperm.slane %v1712, 1
    %v1716 = vperm.slane %v1712, 2
    %v1717 = vperm.slane %v1712, 3
    %vm1722 = vcmp.gt.f32.partialorder %v1436, %v1714
    %vm1723 = vcmp.gt.f32.partialorder %v1527, %v1715
    %vm1724 = vcmp.gt.f32.partialorder %v1618, %v1716
    %vm1725 = vcmp.gt.f32.partialorder %v1709, %v1717
    %v1726 = vsel %vm1722, 1, 0
    %v1727 = vsel %vm1723, 1, 0
    %v1728 = vsel %vm1724, 1, 0
    %v1729 = vsel %vm1725, 1, 0
    %v1730 = vcvt.s32.f32 %v1726
    %v1731 = vcvt.s32.f32 %v1727
    %v1732 = vcvt.s32.f32 %v1728
    %v1733 = vcvt.s32.f32 %v1729
    %v1734 = vpack.c.bf16 %v1730, %v1730
    %v1735 = vpack.c.bf16 %v1731, %v1731
    %v1736 = vpack.c.bf16 %v1732, %v1732
    %v1737 = vpack.c.bf16 %v1733, %v1733
    %v1738 = vld [vmem:[#allocation8] sm:$0xff]
    %v1739 = vld [vmem:[#allocation8 + $0x8] sm:$0xff]
    %v1740 = vld [vmem:[#allocation8 + $0x10] sm:$0xff]
    %v1741 = vld [vmem:[#allocation8 + $0x18] sm:$0xff]
    %v1742 = vld [vmem:[#allocation8 + $0x20] sm:$0xff]
    %v1743 = vld [vmem:[#allocation8 + $0x28] sm:$0xff]
    %v1744 = vld [vmem:[#allocation8 + $0x30] sm:$0xff]
    %v1745 = vld [vmem:[#allocation8 + $0x38] sm:$0xff]
    %v1746 = vld [vmem:[#allocation8 + $0x40] sm:$0xff]
    %v1747 = vld [vmem:[#allocation8 + $0x48] sm:$0xff]
    %v1748 = vld [vmem:[#allocation8 + $0x50] sm:$0xff]
    %v1749 = vld [vmem:[#allocation8 + $0x58] sm:$0xff]
    %v1750 = vld [vmem:[#allocation8 + $0x60] sm:$0xff]
    %v1751 = vld [vmem:[#allocation8 + $0x68] sm:$0xff]
    %v1752 = vld [vmem:[#allocation8 + $0x70] sm:$0xff]
    %v1753 = vld [vmem:[#allocation8 + $0x78] sm:$0xff]
    %v1754 = vld [vmem:[#allocation8 + $0x80] sm:$0xff]
    %v1755 = vld [vmem:[#allocation8 + $0x88] sm:$0xff]
    %v1756 = vld [vmem:[#allocation8 + $0x90] sm:$0xff]
    %v1757 = vld [vmem:[#allocation8 + $0x98] sm:$0xff]
    %v1758 = vld [vmem:[#allocation8 + $0xa0] sm:$0xff]
    %v1759 = vld [vmem:[#allocation8 + $0xa8] sm:$0xff]
    %v1760 = vld [vmem:[#allocation8 + $0xb0] sm:$0xff]
    %v1761 = vld [vmem:[#allocation8 + $0xb8] sm:$0xff]
    %v1762 = vld [vmem:[#allocation8 + $0xc0] sm:$0xff]
    %v1763 = vld [vmem:[#allocation8 + $0xc8] sm:$0xff]
    %v1764 = vld [vmem:[#allocation8 + $0xd0] sm:$0xff]
    %v1765 = vld [vmem:[#allocation8 + $0xd8] sm:$0xff]
    %v1766 = vld [vmem:[#allocation8 + $0xe0] sm:$0xff]
    %v1767 = vld [vmem:[#allocation8 + $0xe8] sm:$0xff]
    %v1768 = vld [vmem:[#allocation8 + $0xf0] sm:$0xff]
    %v1769 = vld [vmem:[#allocation8 + $0xf8] sm:$0xff]
    %v1770 = vld [vmem:[#allocation8 + $0x100] sm:$0xff]
    %v1771 = vld [vmem:[#allocation8 + $0x108] sm:$0xff]
    %v1772 = vld [vmem:[#allocation8 + $0x110] sm:$0xff]
    %v1773 = vld [vmem:[#allocation8 + $0x118] sm:$0xff]
    %v1774 = vld [vmem:[#allocation8 + $0x120] sm:$0xff]
    %v1775 = vld [vmem:[#allocation8 + $0x128] sm:$0xff]
    %v1776 = vld [vmem:[#allocation8 + $0x130] sm:$0xff]
    %v1777 = vld [vmem:[#allocation8 + $0x138] sm:$0xff]
    %v1778 = vld [vmem:[#allocation8 + $0x140] sm:$0xff]
    %v1779 = vld [vmem:[#allocation8 + $0x148] sm:$0xff]
    %v1780 = vld [vmem:[#allocation8 + $0x150] sm:$0xff]
    %v1781 = vld [vmem:[#allocation8 + $0x158] sm:$0xff]
    %v1782 = vld [vmem:[#allocation8 + $0x160] sm:$0xff]
    %v1783 = vld [vmem:[#allocation8 + $0x168] sm:$0xff]
    %v1784 = vld [vmem:[#allocation8 + $0x170] sm:$0xff]
    %v1785 = vld [vmem:[#allocation8 + $0x178] sm:$0xff]
    %v1786 = vld [vmem:[#allocation8 + $0x180] sm:$0xff]
    %v1787 = vld [vmem:[#allocation8 + $0x188] sm:$0xff]
    %v1788 = vld [vmem:[#allocation8 + $0x190] sm:$0xff]
    %v1789 = vld [vmem:[#allocation8 + $0x198] sm:$0xff]
    %v1790 = vld [vmem:[#allocation8 + $0x1a0] sm:$0xff]
    %v1791 = vld [vmem:[#allocation8 + $0x1a8] sm:$0xff]
    %v1792 = vld [vmem:[#allocation8 + $0x1b0] sm:$0xff]
    %v1793 = vld [vmem:[#allocation8 + $0x1b8] sm:$0xff]
    %v1794 = vld [vmem:[#allocation8 + $0x1c0] sm:$0xff]
    %v1795 = vld [vmem:[#allocation8 + $0x1c8] sm:$0xff]
    %v1796 = vld [vmem:[#allocation8 + $0x1d0] sm:$0xff]
    %v1797 = vld [vmem:[#allocation8 + $0x1d8] sm:$0xff]
    %v1798 = vld [vmem:[#allocation8 + $0x1e0] sm:$0xff]
    %v1799 = vld [vmem:[#allocation8 + $0x1e8] sm:$0xff]
    %v1800 = vld [vmem:[#allocation8 + $0x1f0] sm:$0xff]
    %v1801 = vld [vmem:[#allocation8 + $0x1f8] sm:$0xff]
    %v1802 = vld [vmem:[#allocation8 + $0x200] sm:$0xff]
    %v1803 = vld [vmem:[#allocation8 + $0x208] sm:$0xff]
    %v1804 = vld [vmem:[#allocation8 + $0x210] sm:$0xff]
    %v1805 = vld [vmem:[#allocation8 + $0x218] sm:$0xff]
    %v1806 = vld [vmem:[#allocation8 + $0x220] sm:$0xff]
    %v1807 = vld [vmem:[#allocation8 + $0x228] sm:$0xff]
    %v1808 = vld [vmem:[#allocation8 + $0x230] sm:$0xff]
    %v1809 = vld [vmem:[#allocation8 + $0x238] sm:$0xff]
    %v1810 = vld [vmem:[#allocation8 + $0x240] sm:$0xff]
    %v1811 = vld [vmem:[#allocation8 + $0x248] sm:$0xff]
    %v1812 = vld [vmem:[#allocation8 + $0x250] sm:$0xff]
    %v1813 = vld [vmem:[#allocation8 + $0x258] sm:$0xff]
    %v1814 = vld [vmem:[#allocation8 + $0x260] sm:$0xff]
    %v1815 = vld [vmem:[#allocation8 + $0x268] sm:$0xff]
    %v1816 = vld [vmem:[#allocation8 + $0x270] sm:$0xff]
    %v1817 = vld [vmem:[#allocation8 + $0x278] sm:$0xff]
    %v1818 = vld [vmem:[#allocation8 + $0x280] sm:$0xff]
    %v1819 = vld [vmem:[#allocation8 + $0x288] sm:$0xff]
    %v1820 = vld [vmem:[#allocation8 + $0x290] sm:$0xff]
    %v1821 = vld [vmem:[#allocation8 + $0x298] sm:$0xff]
    %v1822 = vld [vmem:[#allocation8 + $0x2a0] sm:$0xff]
    %v1823 = vld [vmem:[#allocation8 + $0x2a8] sm:$0xff]
    %v1824 = vld [vmem:[#allocation8 + $0x2b0] sm:$0xff]
    %v1825 = vld [vmem:[#allocation8 + $0x2b8] sm:$0xff]
    %v1826 = vld [vmem:[#allocation8 + $0x2c0] sm:$0xff]
    %v1827 = vld [vmem:[#allocation8 + $0x2c8] sm:$0xff]
    %v1828 = vld [vmem:[#allocation8 + $0x2d0] sm:$0xff]
    %v1829 = vld [vmem:[#allocation8 + $0x2d8] sm:$0xff]
    %v1830 = vld [vmem:[#allocation8 + $0x2e0] sm:$0xff]
    %v1831 = vld [vmem:[#allocation8 + $0x2e8] sm:$0xff]
    %v1832 = vld [vmem:[#allocation8 + $0x2f0] sm:$0xff]
    %v1833 = vld [vmem:[#allocation8 + $0x2f8] sm:$0xff]
    %v1834 = vld [vmem:[#allocation8 + $0x300] sm:$0xff]
    %v1835 = vld [vmem:[#allocation8 + $0x308] sm:$0xff]
    %v1836 = vld [vmem:[#allocation8 + $0x310] sm:$0xff]
    %v1837 = vld [vmem:[#allocation8 + $0x318] sm:$0xff]
    %v1838 = vld [vmem:[#allocation8 + $0x320] sm:$0xff]
    %v1839 = vld [vmem:[#allocation8 + $0x328] sm:$0xff]
    %v1840 = vld [vmem:[#allocation8 + $0x330] sm:$0xff]
    %v1841 = vld [vmem:[#allocation8 + $0x338] sm:$0xff]
    %v1842 = vld [vmem:[#allocation8 + $0x340] sm:$0xff]
    %v1843 = vld [vmem:[#allocation8 + $0x348] sm:$0xff]
    %v1844 = vld [vmem:[#allocation8 + $0x350] sm:$0xff]
    %v1845 = vld [vmem:[#allocation8 + $0x358] sm:$0xff]
    %v1846 = vld [vmem:[#allocation8 + $0x360] sm:$0xff]
    %v1847 = vld [vmem:[#allocation8 + $0x368] sm:$0xff]
    %v1848 = vld [vmem:[#allocation8 + $0x370] sm:$0xff]
    %v1849 = vld [vmem:[#allocation8 + $0x378] sm:$0xff]
    %v1850 = vld [vmem:[#allocation8 + $0x380] sm:$0xff]
    %v1851 = vld [vmem:[#allocation8 + $0x388] sm:$0xff]
    %v1852 = vld [vmem:[#allocation8 + $0x390] sm:$0xff]
    %v1853 = vld [vmem:[#allocation8 + $0x398] sm:$0xff]
    %v1854 = vld [vmem:[#allocation8 + $0x3a0] sm:$0xff]
    %v1855 = vld [vmem:[#allocation8 + $0x3a8] sm:$0xff]
    %v1856 = vld [vmem:[#allocation8 + $0x3b0] sm:$0xff]
    %v1857 = vld [vmem:[#allocation8 + $0x3b8] sm:$0xff]
    %v1858 = vld [vmem:[#allocation8 + $0x3c0] sm:$0xff]
    %v1859 = vld [vmem:[#allocation8 + $0x3c8] sm:$0xff]
    %v1860 = vld [vmem:[#allocation8 + $0x3d0] sm:$0xff]
    %v1861 = vld [vmem:[#allocation8 + $0x3d8] sm:$0xff]
    %v1862 = vld [vmem:[#allocation8 + $0x3e0] sm:$0xff]
    %v1863 = vld [vmem:[#allocation8 + $0x3e8] sm:$0xff]
    %v1864 = vld [vmem:[#allocation8 + $0x3f0] sm:$0xff]
    %v1865 = vld [vmem:[#allocation8 + $0x3f8] sm:$0xff]
    %v1994 = vunpack.c.l.b16 %v1738
    %v1995 = vunpack.c.h.b16 %v1738
    %v1996 = vunpack.c.l.b16 %v1739
    %v1997 = vunpack.c.h.b16 %v1739
    %v1998 = vunpack.c.l.b16 %v1740
    %v1999 = vunpack.c.h.b16 %v1740
    %v2000 = vunpack.c.l.b16 %v1741
    %v2001 = vunpack.c.h.b16 %v1741
    %v2002 = vunpack.c.l.b16 %v1742
    %v2003 = vunpack.c.h.b16 %v1742
    %v2004 = vunpack.c.l.b16 %v1743
    %v2005 = vunpack.c.h.b16 %v1743
    %v2006 = vunpack.c.l.b16 %v1744
    %v2007 = vunpack.c.h.b16 %v1744
    %v2008 = vunpack.c.l.b16 %v1745
    %v2009 = vunpack.c.h.b16 %v1745
    %v2010 = vunpack.c.l.b16 %v1746
    %v2011 = vunpack.c.h.b16 %v1746
    %v2012 = vunpack.c.l.b16 %v1747
    %v2013 = vunpack.c.h.b16 %v1747
    %v2014 = vunpack.c.l.b16 %v1748
    %v2015 = vunpack.c.h.b16 %v1748
    %v2016 = vunpack.c.l.b16 %v1749
    %v2017 = vunpack.c.h.b16 %v1749
    %v2018 = vunpack.c.l.b16 %v1750
    %v2019 = vunpack.c.h.b16 %v1750
    %v2020 = vunpack.c.l.b16 %v1751
    %v2021 = vunpack.c.h.b16 %v1751
    %v2022 = vunpack.c.l.b16 %v1752
    %v2023 = vunpack.c.h.b16 %v1752
    %v2024 = vunpack.c.l.b16 %v1753
    %v2025 = vunpack.c.h.b16 %v1753
    %v2026 = vunpack.c.l.b16 %v1754
    %v2027 = vunpack.c.h.b16 %v1754
    %v2028 = vunpack.c.l.b16 %v1755
    %v2029 = vunpack.c.h.b16 %v1755
    %v2030 = vunpack.c.l.b16 %v1756
    %v2031 = vunpack.c.h.b16 %v1756
    %v2032 = vunpack.c.l.b16 %v1757
    %v2033 = vunpack.c.h.b16 %v1757
    %v2034 = vunpack.c.l.b16 %v1758
    %v2035 = vunpack.c.h.b16 %v1758
    %v2036 = vunpack.c.l.b16 %v1759
    %v2037 = vunpack.c.h.b16 %v1759
    %v2038 = vunpack.c.l.b16 %v1760
    %v2039 = vunpack.c.h.b16 %v1760
    %v2040 = vunpack.c.l.b16 %v1761
    %v2041 = vunpack.c.h.b16 %v1761
    %v2042 = vunpack.c.l.b16 %v1762
    %v2043 = vunpack.c.h.b16 %v1762
    %v2044 = vunpack.c.l.b16 %v1763
    %v2045 = vunpack.c.h.b16 %v1763
    %v2046 = vunpack.c.l.b16 %v1764
    %v2047 = vunpack.c.h.b16 %v1764
    %v2048 = vunpack.c.l.b16 %v1765
    %v2049 = vunpack.c.h.b16 %v1765
    %v2050 = vunpack.c.l.b16 %v1766
    %v2051 = vunpack.c.h.b16 %v1766
    %v2052 = vunpack.c.l.b16 %v1767
    %v2053 = vunpack.c.h.b16 %v1767
    %v2054 = vunpack.c.l.b16 %v1768
    %v2055 = vunpack.c.h.b16 %v1768
    %v2056 = vunpack.c.l.b16 %v1769
    %v2057 = vunpack.c.h.b16 %v1769
    %v2058 = vunpack.c.l.b16 %v1770
    %v2059 = vunpack.c.h.b16 %v1770
    %v2060 = vunpack.c.l.b16 %v1771
    %v2061 = vunpack.c.h.b16 %v1771
    %v2062 = vunpack.c.l.b16 %v1772
    %v2063 = vunpack.c.h.b16 %v1772
    %v2064 = vunpack.c.l.b16 %v1773
    %v2065 = vunpack.c.h.b16 %v1773
    %v2066 = vunpack.c.l.b16 %v1774
    %v2067 = vunpack.c.h.b16 %v1774
    %v2068 = vunpack.c.l.b16 %v1775
    %v2069 = vunpack.c.h.b16 %v1775
    %v2070 = vunpack.c.l.b16 %v1776
    %v2071 = vunpack.c.h.b16 %v1776
    %v2072 = vunpack.c.l.b16 %v1777
    %v2073 = vunpack.c.h.b16 %v1777
    %v2074 = vunpack.c.l.b16 %v1778
    %v2075 = vunpack.c.h.b16 %v1778
    %v2076 = vunpack.c.l.b16 %v1779
    %v2077 = vunpack.c.h.b16 %v1779
    %v2078 = vunpack.c.l.b16 %v1780
    %v2079 = vunpack.c.h.b16 %v1780
    %v2080 = vunpack.c.l.b16 %v1781
    %v2081 = vunpack.c.h.b16 %v1781
    %v2082 = vunpack.c.l.b16 %v1782
    %v2083 = vunpack.c.h.b16 %v1782
    %v2084 = vunpack.c.l.b16 %v1783
    %v2085 = vunpack.c.h.b16 %v1783
    %v2086 = vunpack.c.l.b16 %v1784
    %v2087 = vunpack.c.h.b16 %v1784
    %v2088 = vunpack.c.l.b16 %v1785
    %v2089 = vunpack.c.h.b16 %v1785
    %v2090 = vunpack.c.l.b16 %v1786
    %v2091 = vunpack.c.h.b16 %v1786
    %v2092 = vunpack.c.l.b16 %v1787
    %v2093 = vunpack.c.h.b16 %v1787
    %v2094 = vunpack.c.l.b16 %v1788
    %v2095 = vunpack.c.h.b16 %v1788
    %v2096 = vunpack.c.l.b16 %v1789
    %v2097 = vunpack.c.h.b16 %v1789
    %v2098 = vunpack.c.l.b16 %v1790
    %v2099 = vunpack.c.h.b16 %v1790
    %v2100 = vunpack.c.l.b16 %v1791
    %v2101 = vunpack.c.h.b16 %v1791
    %v2102 = vunpack.c.l.b16 %v1792
    %v2103 = vunpack.c.h.b16 %v1792
    %v2104 = vunpack.c.l.b16 %v1793
    %v2105 = vunpack.c.h.b16 %v1793
    %v2106 = vunpack.c.l.b16 %v1794
    %v2107 = vunpack.c.h.b16 %v1794
    %v2108 = vunpack.c.l.b16 %v1795
    %v2109 = vunpack.c.h.b16 %v1795
    %v2110 = vunpack.c.l.b16 %v1796
    %v2111 = vunpack.c.h.b16 %v1796
    %v2112 = vunpack.c.l.b16 %v1797
    %v2113 = vunpack.c.h.b16 %v1797
    %v2114 = vunpack.c.l.b16 %v1798
    %v2115 = vunpack.c.h.b16 %v1798
    %v2116 = vunpack.c.l.b16 %v1799
    %v2117 = vunpack.c.h.b16 %v1799
    %v2118 = vunpack.c.l.b16 %v1800
    %v2119 = vunpack.c.h.b16 %v1800
    %v2120 = vunpack.c.l.b16 %v1801
    %v2121 = vunpack.c.h.b16 %v1801
    %v2122 = vunpack.c.l.b16 %v1802
    %v2123 = vunpack.c.h.b16 %v1802
    %v2124 = vunpack.c.l.b16 %v1803
    %v2125 = vunpack.c.h.b16 %v1803
    %v2126 = vunpack.c.l.b16 %v1804
    %v2127 = vunpack.c.h.b16 %v1804
    %v2128 = vunpack.c.l.b16 %v1805
    %v2129 = vunpack.c.h.b16 %v1805
    %v2130 = vunpack.c.l.b16 %v1806
    %v2131 = vunpack.c.h.b16 %v1806
    %v2132 = vunpack.c.l.b16 %v1807
    %v2133 = vunpack.c.h.b16 %v1807
    %v2134 = vunpack.c.l.b16 %v1808
    %v2135 = vunpack.c.h.b16 %v1808
    %v2136 = vunpack.c.l.b16 %v1809
    %v2137 = vunpack.c.h.b16 %v1809
    %v2138 = vunpack.c.l.b16 %v1810
    %v2139 = vunpack.c.h.b16 %v1810
    %v2140 = vunpack.c.l.b16 %v1811
    %v2141 = vunpack.c.h.b16 %v1811
    %v2142 = vunpack.c.l.b16 %v1812
    %v2143 = vunpack.c.h.b16 %v1812
    %v2144 = vunpack.c.l.b16 %v1813
    %v2145 = vunpack.c.h.b16 %v1813
    %v2146 = vunpack.c.l.b16 %v1814
    %v2147 = vunpack.c.h.b16 %v1814
    %v2148 = vunpack.c.l.b16 %v1815
    %v2149 = vunpack.c.h.b16 %v1815
    %v2150 = vunpack.c.l.b16 %v1816
    %v2151 = vunpack.c.h.b16 %v1816
    %v2152 = vunpack.c.l.b16 %v1817
    %v2153 = vunpack.c.h.b16 %v1817
    %v2154 = vunpack.c.l.b16 %v1818
    %v2155 = vunpack.c.h.b16 %v1818
    %v2156 = vunpack.c.l.b16 %v1819
    %v2157 = vunpack.c.h.b16 %v1819
    %v2158 = vunpack.c.l.b16 %v1820
    %v2159 = vunpack.c.h.b16 %v1820
    %v2160 = vunpack.c.l.b16 %v1821
    %v2161 = vunpack.c.h.b16 %v1821
    %v2162 = vunpack.c.l.b16 %v1822
    %v2163 = vunpack.c.h.b16 %v1822
    %v2164 = vunpack.c.l.b16 %v1823
    %v2165 = vunpack.c.h.b16 %v1823
    %v2166 = vunpack.c.l.b16 %v1824
    %v2167 = vunpack.c.h.b16 %v1824
    %v2168 = vunpack.c.l.b16 %v1825
    %v2169 = vunpack.c.h.b16 %v1825
    %v2170 = vunpack.c.l.b16 %v1826
    %v2171 = vunpack.c.h.b16 %v1826
    %v2172 = vunpack.c.l.b16 %v1827
    %v2173 = vunpack.c.h.b16 %v1827
    %v2174 = vunpack.c.l.b16 %v1828
    %v2175 = vunpack.c.h.b16 %v1828
    %v2176 = vunpack.c.l.b16 %v1829
    %v2177 = vunpack.c.h.b16 %v1829
    %v2178 = vunpack.c.l.b16 %v1830
    %v2179 = vunpack.c.h.b16 %v1830
    %v2180 = vunpack.c.l.b16 %v1831
    %v2181 = vunpack.c.h.b16 %v1831
    %v2182 = vunpack.c.l.b16 %v1832
    %v2183 = vunpack.c.h.b16 %v1832
    %v2184 = vunpack.c.l.b16 %v1833
    %v2185 = vunpack.c.h.b16 %v1833
    %v2186 = vunpack.c.l.b16 %v1834
    %v2187 = vunpack.c.h.b16 %v1834
    %v2188 = vunpack.c.l.b16 %v1835
    %v2189 = vunpack.c.h.b16 %v1835
    %v2190 = vunpack.c.l.b16 %v1836
    %v2191 = vunpack.c.h.b16 %v1836
    %v2192 = vunpack.c.l.b16 %v1837
    %v2193 = vunpack.c.h.b16 %v1837
    %v2194 = vunpack.c.l.b16 %v1838
    %v2195 = vunpack.c.h.b16 %v1838
    %v2196 = vunpack.c.l.b16 %v1839
    %v2197 = vunpack.c.h.b16 %v1839
    %v2198 = vunpack.c.l.b16 %v1840
    %v2199 = vunpack.c.h.b16 %v1840
    %v2200 = vunpack.c.l.b16 %v1841
    %v2201 = vunpack.c.h.b16 %v1841
    %v2202 = vunpack.c.l.b16 %v1842
    %v2203 = vunpack.c.h.b16 %v1842
    %v2204 = vunpack.c.l.b16 %v1843
    %v2205 = vunpack.c.h.b16 %v1843
    %v2206 = vunpack.c.l.b16 %v1844
    %v2207 = vunpack.c.h.b16 %v1844
    %v2208 = vunpack.c.l.b16 %v1845
    %v2209 = vunpack.c.h.b16 %v1845
    %v2210 = vunpack.c.l.b16 %v1846
    %v2211 = vunpack.c.h.b16 %v1846
    %v2212 = vunpack.c.l.b16 %v1847
    %v2213 = vunpack.c.h.b16 %v1847
    %v2214 = vunpack.c.l.b16 %v1848
    %v2215 = vunpack.c.h.b16 %v1848
    %v2216 = vunpack.c.l.b16 %v1849
    %v2217 = vunpack.c.h.b16 %v1849
    %v2218 = vunpack.c.l.b16 %v1850
    %v2219 = vunpack.c.h.b16 %v1850
    %v2220 = vunpack.c.l.b16 %v1851
    %v2221 = vunpack.c.h.b16 %v1851
    %v2222 = vunpack.c.l.b16 %v1852
    %v2223 = vunpack.c.h.b16 %v1852
    %v2224 = vunpack.c.l.b16 %v1853
    %v2225 = vunpack.c.h.b16 %v1853
    %v2226 = vunpack.c.l.b16 %v1854
    %v2227 = vunpack.c.h.b16 %v1854
    %v2228 = vunpack.c.l.b16 %v1855
    %v2229 = vunpack.c.h.b16 %v1855
    %v2230 = vunpack.c.l.b16 %v1856
    %v2231 = vunpack.c.h.b16 %v1856
    %v2232 = vunpack.c.l.b16 %v1857
    %v2233 = vunpack.c.h.b16 %v1857
    %v2234 = vunpack.c.l.b16 %v1858
    %v2235 = vunpack.c.h.b16 %v1858
    %v2236 = vunpack.c.l.b16 %v1859
    %v2237 = vunpack.c.h.b16 %v1859
    %v2238 = vunpack.c.l.b16 %v1860
    %v2239 = vunpack.c.h.b16 %v1860
    %v2240 = vunpack.c.l.b16 %v1861
    %v2241 = vunpack.c.h.b16 %v1861
    %v2242 = vunpack.c.l.b16 %v1862
    %v2243 = vunpack.c.h.b16 %v1862
    %v2244 = vunpack.c.l.b16 %v1863
    %v2245 = vunpack.c.h.b16 %v1863
    %v2246 = vunpack.c.l.b16 %v1864
    %v2247 = vunpack.c.h.b16 %v1864
    %v2248 = vunpack.c.l.b16 %v1865
    %v2249 = vunpack.c.h.b16 %v1865
    %v2250 = vpack.c.b16 %v1998, %v1994
    %v2251 = vpack.c.b16 %v1999, %v1995
    %v2252 = vpack.c.b16 %v2000, %v1996
    %v2253 = vpack.c.b16 %v2001, %v1997
    %v2254 = vpack.c.b16 %v2006, %v2002
    %v2255 = vpack.c.b16 %v2007, %v2003
    %v2256 = vpack.c.b16 %v2008, %v2004
    %v2257 = vpack.c.b16 %v2009, %v2005
    %v2258 = vpack.c.b16 %v2014, %v2010
    %v2259 = vpack.c.b16 %v2015, %v2011
    %v2260 = vpack.c.b16 %v2016, %v2012
    %v2261 = vpack.c.b16 %v2017, %v2013
    %v2262 = vpack.c.b16 %v2022, %v2018
    %v2263 = vpack.c.b16 %v2023, %v2019
    %v2264 = vpack.c.b16 %v2024, %v2020
    %v2265 = vpack.c.b16 %v2025, %v2021
    %v2266 = vpack.c.b16 %v2030, %v2026
    %v2267 = vpack.c.b16 %v2031, %v2027
    %v2268 = vpack.c.b16 %v2032, %v2028
    %v2269 = vpack.c.b16 %v2033, %v2029
    %v2270 = vpack.c.b16 %v2038, %v2034
    %v2271 = vpack.c.b16 %v2039, %v2035
    %v2272 = vpack.c.b16 %v2040, %v2036
    %v2273 = vpack.c.b16 %v2041, %v2037
    %v2274 = vpack.c.b16 %v2046, %v2042
    %v2275 = vpack.c.b16 %v2047, %v2043
    %v2276 = vpack.c.b16 %v2048, %v2044
    %v2277 = vpack.c.b16 %v2049, %v2045
    %v2278 = vpack.c.b16 %v2054, %v2050
    %v2279 = vpack.c.b16 %v2055, %v2051
    %v2280 = vpack.c.b16 %v2056, %v2052
    %v2281 = vpack.c.b16 %v2057, %v2053
    %v2282 = vpack.c.b16 %v2062, %v2058
    %v2283 = vpack.c.b16 %v2063, %v2059
    %v2284 = vpack.c.b16 %v2064, %v2060
    %v2285 = vpack.c.b16 %v2065, %v2061
    %v2286 = vpack.c.b16 %v2070, %v2066
    %v2287 = vpack.c.b16 %v2071, %v2067
    %v2288 = vpack.c.b16 %v2072, %v2068
    %v2289 = vpack.c.b16 %v2073, %v2069
    %v2290 = vpack.c.b16 %v2078, %v2074
    %v2291 = vpack.c.b16 %v2079, %v2075
    %v2292 = vpack.c.b16 %v2080, %v2076
    %v2293 = vpack.c.b16 %v2081, %v2077
    %v2294 = vpack.c.b16 %v2086, %v2082
    %v2295 = vpack.c.b16 %v2087, %v2083
    %v2296 = vpack.c.b16 %v2088, %v2084
    %v2297 = vpack.c.b16 %v2089, %v2085
    %v2298 = vpack.c.b16 %v2094, %v2090
    %v2299 = vpack.c.b16 %v2095, %v2091
    %v2300 = vpack.c.b16 %v2096, %v2092
    %v2301 = vpack.c.b16 %v2097, %v2093
    %v2302 = vpack.c.b16 %v2102, %v2098
    %v2303 = vpack.c.b16 %v2103, %v2099
    %v2304 = vpack.c.b16 %v2104, %v2100
    %v2305 = vpack.c.b16 %v2105, %v2101
    %v2306 = vpack.c.b16 %v2110, %v2106
    %v2307 = vpack.c.b16 %v2111, %v2107
    %v2308 = vpack.c.b16 %v2112, %v2108
    %v2309 = vpack.c.b16 %v2113, %v2109
    %v2310 = vpack.c.b16 %v2118, %v2114
    %v2311 = vpack.c.b16 %v2119, %v2115
    %v2312 = vpack.c.b16 %v2120, %v2116
    %v2313 = vpack.c.b16 %v2121, %v2117
    %v2314 = vpack.c.b16 %v2126, %v2122
    %v2315 = vpack.c.b16 %v2127, %v2123
    %v2316 = vpack.c.b16 %v2128, %v2124
    %v2317 = vpack.c.b16 %v2129, %v2125
    %v2318 = vpack.c.b16 %v2134, %v2130
    %v2319 = vpack.c.b16 %v2135, %v2131
    %v2320 = vpack.c.b16 %v2136, %v2132
    %v2321 = vpack.c.b16 %v2137, %v2133
    %v2322 = vpack.c.b16 %v2142, %v2138
    %v2323 = vpack.c.b16 %v2143, %v2139
    %v2324 = vpack.c.b16 %v2144, %v2140
    %v2325 = vpack.c.b16 %v2145, %v2141
    %v2326 = vpack.c.b16 %v2150, %v2146
    %v2327 = vpack.c.b16 %v2151, %v2147
    %v2328 = vpack.c.b16 %v2152, %v2148
    %v2329 = vpack.c.b16 %v2153, %v2149
    %v2330 = vpack.c.b16 %v2158, %v2154
    %v2331 = vpack.c.b16 %v2159, %v2155
    %v2332 = vpack.c.b16 %v2160, %v2156
    %v2333 = vpack.c.b16 %v2161, %v2157
    %v2334 = vpack.c.b16 %v2166, %v2162
    %v2335 = vpack.c.b16 %v2167, %v2163
    %v2336 = vpack.c.b16 %v2168, %v2164
    %v2337 = vpack.c.b16 %v2169, %v2165
    %v2338 = vpack.c.b16 %v2174, %v2170
    %v2339 = vpack.c.b16 %v2175, %v2171
    %v2340 = vpack.c.b16 %v2176, %v2172
    %v2341 = vpack.c.b16 %v2177, %v2173
    %v2342 = vpack.c.b16 %v2182, %v2178
    %v2343 = vpack.c.b16 %v2183, %v2179
    %v2344 = vpack.c.b16 %v2184, %v2180
    %v2345 = vpack.c.b16 %v2185, %v2181
    %v2346 = vpack.c.b16 %v2190, %v2186
    %v2347 = vpack.c.b16 %v2191, %v2187
    %v2348 = vpack.c.b16 %v2192, %v2188
    %v2349 = vpack.c.b16 %v2193, %v2189
    %v2350 = vpack.c.b16 %v2198, %v2194
    %v2351 = vpack.c.b16 %v2199, %v2195
    %v2352 = vpack.c.b16 %v2200, %v2196
    %v2353 = vpack.c.b16 %v2201, %v2197
    %v2354 = vpack.c.b16 %v2206, %v2202
    %v2355 = vpack.c.b16 %v2207, %v2203
    %v2356 = vpack.c.b16 %v2208, %v2204
    %v2357 = vpack.c.b16 %v2209, %v2205
    %v2358 = vpack.c.b16 %v2214, %v2210
    %v2359 = vpack.c.b16 %v2215, %v2211
    %v2360 = vpack.c.b16 %v2216, %v2212
    %v2361 = vpack.c.b16 %v2217, %v2213
    %v2362 = vpack.c.b16 %v2222, %v2218
    %v2363 = vpack.c.b16 %v2223, %v2219
    %v2364 = vpack.c.b16 %v2224, %v2220
    %v2365 = vpack.c.b16 %v2225, %v2221
    %v2366 = vpack.c.b16 %v2230, %v2226
    %v2367 = vpack.c.b16 %v2231, %v2227
    %v2368 = vpack.c.b16 %v2232, %v2228
    %v2369 = vpack.c.b16 %v2233, %v2229
    %v2370 = vpack.c.b16 %v2238, %v2234
    %v2371 = vpack.c.b16 %v2239, %v2235
    %v2372 = vpack.c.b16 %v2240, %v2236
    %v2373 = vpack.c.b16 %v2241, %v2237
    %v2374 = vpack.c.b16 %v2246, %v2242
    %v2375 = vpack.c.b16 %v2247, %v2243
    %v2376 = vpack.c.b16 %v2248, %v2244
    %v2377 = vpack.c.b16 %v2249, %v2245
    %2506 = vmatpush.bf16.msra.mxu0 %v2278
    %2507 = vmatpush.bf16.msra.mxu0 %v2274
    %2508 = vmatpush.bf16.msra.mxu0 %v2270
    %2509 = vmatpush.bf16.msra.mxu0 %v2266
    %2510 = vmatpush.bf16.msra.mxu0 %v2262
    %2511 = vmatpush.bf16.msra.mxu0 %v2258
    %2512 = vmatpush.bf16.msra.mxu0 %v2254
    %2513 = vmatpush.bf16.msra.mxu0 %v2250
    %2514 = vmatmul.bf16.gmra.mxu0 %v1734
    %v2515 = vpop.f32.mrf.mxu0
    %v2516 = vadd.f32 0.0, %v2515
    %v2517 = vpop.f32.mrf.mxu0
    %2518 = vdwg.mxu0
    %2519 = vmatpush.bf16.msra.mxu0 %v2310
    %2520 = vmatpush.bf16.msra.mxu0 %v2306
    %2521 = vmatpush.bf16.msra.mxu0 %v2302
    %2522 = vmatpush.bf16.msra.mxu0 %v2298
    %2523 = vmatpush.bf16.msra.mxu0 %v2294
    %2524 = vmatpush.bf16.msra.mxu0 %v2290
    %2525 = vmatpush.bf16.msra.mxu0 %v2286
    %2526 = vmatpush.bf16.msra.mxu0 %v2282
    %2527 = vmatmul.bf16.gmra.mxu0 %v1735
    %v2528 = vpop.f32.mrf.mxu0
    %v2529 = vadd.f32 %v2516, %v2528
    %v2530 = vpop.f32.mrf.mxu0
    %2531 = vdwg.mxu0
    %2532 = vmatpush.bf16.msra.mxu0 %v2342
    %2533 = vmatpush.bf16.msra.mxu0 %v2338
    %2534 = vmatpush.bf16.msra.mxu0 %v2334
    %2535 = vmatpush.bf16.msra.mxu0 %v2330
    %2536 = vmatpush.bf16.msra.mxu0 %v2326
    %2537 = vmatpush.bf16.msra.mxu0 %v2322
    %2538 = vmatpush.bf16.msra.mxu0 %v2318
    %2539 = vmatpush.bf16.msra.mxu0 %v2314
    %2540 = vmatmul.bf16.gmra.mxu0 %v1736
    %v2541 = vpop.f32.mrf.mxu0
    %v2542 = vadd.f32 %v2529, %v2541
    %v2543 = vpop.f32.mrf.mxu0
    %2544 = vdwg.mxu0
    %2545 = vmatpush.bf16.msra.mxu0 %v2374
    %2546 = vmatpush.bf16.msra.mxu0 %v2370
    %2547 = vmatpush.bf16.msra.mxu0 %v2366
    %2548 = vmatpush.bf16.msra.mxu0 %v2362
    %2549 = vmatpush.bf16.msra.mxu0 %v2358
    %2550 = vmatpush.bf16.msra.mxu0 %v2354
    %2551 = vmatpush.bf16.msra.mxu0 %v2350
    %2552 = vmatpush.bf16.msra.mxu0 %v2346
    %2553 = vmatmul.bf16.gmra.mxu0 %v1737
    %v2554 = vpop.f32.mrf.mxu0
    %v2555 = vadd.f32 %v2542, %v2554
    %v2556 = vpop.f32.mrf.mxu0
    %2557 = vdwg.mxu0
    %2558 = vmatpush.bf16.msra.mxu0 %v2279
    %2559 = vmatpush.bf16.msra.mxu0 %v2275
    %2560 = vmatpush.bf16.msra.mxu0 %v2271
    %2561 = vmatpush.bf16.msra.mxu0 %v2267
    %2562 = vmatpush.bf16.msra.mxu0 %v2263
    %2563 = vmatpush.bf16.msra.mxu0 %v2259
    %2564 = vmatpush.bf16.msra.mxu0 %v2255
    %2565 = vmatpush.bf16.msra.mxu0 %v2251
    %2566 = vmatmul.bf16.gmra.mxu0 %v1734
    %v2567 = vpop.f32.mrf.mxu0
    %v2568 = vadd.f32 0.0, %v2567
    %v2569 = vpop.f32.mrf.mxu0
    %2570 = vdwg.mxu0
    %2571 = vmatpush.bf16.msra.mxu0 %v2311
    %2572 = vmatpush.bf16.msra.mxu0 %v2307
    %2573 = vmatpush.bf16.msra.mxu0 %v2303
    %2574 = vmatpush.bf16.msra.mxu0 %v2299
    %2575 = vmatpush.bf16.msra.mxu0 %v2295
    %2576 = vmatpush.bf16.msra.mxu0 %v2291
    %2577 = vmatpush.bf16.msra.mxu0 %v2287
    %2578 = vmatpush.bf16.msra.mxu0 %v2283
    %2579 = vmatmul.bf16.gmra.mxu0 %v1735
    %v2580 = vpop.f32.mrf.mxu0
    %v2581 = vadd.f32 %v2568, %v2580
    %v2582 = vpop.f32.mrf.mxu0
    %2583 = vdwg.mxu0
    %2584 = vmatpush.bf16.msra.mxu0 %v2343
    %2585 = vmatpush.bf16.msra.mxu0 %v2339
    %2586 = vmatpush.bf16.msra.mxu0 %v2335
    %2587 = vmatpush.bf16.msra.mxu0 %v2331
    %2588 = vmatpush.bf16.msra.mxu0 %v2327
    %2589 = vmatpush.bf16.msra.mxu0 %v2323
    %2590 = vmatpush.bf16.msra.mxu0 %v2319
    %2591 = vmatpush.bf16.msra.mxu0 %v2315
    %2592 = vmatmul.bf16.gmra.mxu0 %v1736
    %v2593 = vpop.f32.mrf.mxu0
    %v2594 = vadd.f32 %v2581, %v2593
    %v2595 = vpop.f32.mrf.mxu0
    %2596 = vdwg.mxu0
    %2597 = vmatpush.bf16.msra.mxu0 %v2375
    %2598 = vmatpush.bf16.msra.mxu0 %v2371
    %2599 = vmatpush.bf16.msra.mxu0 %v2367
    %2600 = vmatpush.bf16.msra.mxu0 %v2363
    %2601 = vmatpush.bf16.msra.mxu0 %v2359
    %2602 = vmatpush.bf16.msra.mxu0 %v2355
    %2603 = vmatpush.bf16.msra.mxu0 %v2351
    %2604 = vmatpush.bf16.msra.mxu0 %v2347
    %2605 = vmatmul.bf16.gmra.mxu0 %v1737
    %v2606 = vpop.f32.mrf.mxu0
    %v2607 = vadd.f32 %v2594, %v2606
    %v2608 = vpop.f32.mrf.mxu0
    %2609 = vdwg.mxu0
    %2610 = vmatpush.bf16.msra.mxu0 %v2280
    %2611 = vmatpush.bf16.msra.mxu0 %v2276
    %2612 = vmatpush.bf16.msra.mxu0 %v2272
    %2613 = vmatpush.bf16.msra.mxu0 %v2268
    %2614 = vmatpush.bf16.msra.mxu0 %v2264
    %2615 = vmatpush.bf16.msra.mxu0 %v2260
    %2616 = vmatpush.bf16.msra.mxu0 %v2256
    %2617 = vmatpush.bf16.msra.mxu0 %v2252
    %2618 = vmatmul.bf16.gmra.mxu0 %v1734
    %v2619 = vpop.f32.mrf.mxu0
    %v2620 = vadd.f32 0.0, %v2619
    %v2621 = vpop.f32.mrf.mxu0
    %2622 = vdwg.mxu0
    %2623 = vmatpush.bf16.msra.mxu0 %v2312
    %2624 = vmatpush.bf16.msra.mxu0 %v2308
    %2625 = vmatpush.bf16.msra.mxu0 %v2304
    %2626 = vmatpush.bf16.msra.mxu0 %v2300
    %2627 = vmatpush.bf16.msra.mxu0 %v2296
    %2628 = vmatpush.bf16.msra.mxu0 %v2292
    %2629 = vmatpush.bf16.msra.mxu0 %v2288
    %2630 = vmatpush.bf16.msra.mxu0 %v2284
    %2631 = vmatmul.bf16.gmra.mxu0 %v1735
    %v2632 = vpop.f32.mrf.mxu0
    %v2633 = vadd.f32 %v2620, %v2632
    %v2634 = vpop.f32.mrf.mxu0
    %2635 = vdwg.mxu0
    %2636 = vmatpush.bf16.msra.mxu0 %v2344
    %2637 = vmatpush.bf16.msra.mxu0 %v2340
    %2638 = vmatpush.bf16.msra.mxu0 %v2336
    %2639 = vmatpush.bf16.msra.mxu0 %v2332
    %2640 = vmatpush.bf16.msra.mxu0 %v2328
    %2641 = vmatpush.bf16.msra.mxu0 %v2324
    %2642 = vmatpush.bf16.msra.mxu0 %v2320
    %2643 = vmatpush.bf16.msra.mxu0 %v2316
    %2644 = vmatmul.bf16.gmra.mxu0 %v1736
    %v2645 = vpop.f32.mrf.mxu0
    %v2646 = vadd.f32 %v2633, %v2645
    %v2647 = vpop.f32.mrf.mxu0
    %2648 = vdwg.mxu0
    %2649 = vmatpush.bf16.msra.mxu0 %v2376
    %2650 = vmatpush.bf16.msra.mxu0 %v2372
    %2651 = vmatpush.bf16.msra.mxu0 %v2368
    %2652 = vmatpush.bf16.msra.mxu0 %v2364
    %2653 = vmatpush.bf16.msra.mxu0 %v2360
    %2654 = vmatpush.bf16.msra.mxu0 %v2356
    %2655 = vmatpush.bf16.msra.mxu0 %v2352
    %2656 = vmatpush.bf16.msra.mxu0 %v2348
    %2657 = vmatmul.bf16.gmra.mxu0 %v1737
    %v2658 = vpop.f32.mrf.mxu0
    %v2659 = vadd.f32 %v2646, %v2658
    %v2660 = vpop.f32.mrf.mxu0
    %2661 = vdwg.mxu0
    %2662 = vmatpush.bf16.msra.mxu0 %v2281
    %2663 = vmatpush.bf16.msra.mxu0 %v2277
    %2664 = vmatpush.bf16.msra.mxu0 %v2273
    %2665 = vmatpush.bf16.msra.mxu0 %v2269
    %2666 = vmatpush.bf16.msra.mxu0 %v2265
    %2667 = vmatpush.bf16.msra.mxu0 %v2261
    %2668 = vmatpush.bf16.msra.mxu0 %v2257
    %2669 = vmatpush.bf16.msra.mxu0 %v2253
    %2670 = vmatmul.bf16.gmra.mxu0 %v1734
    %v2671 = vpop.f32.mrf.mxu0
    %v2672 = vadd.f32 0.0, %v2671
    %v2673 = vpop.f32.mrf.mxu0
    %2674 = vdwg.mxu0
    %2675 = vmatpush.bf16.msra.mxu0 %v2313
    %2676 = vmatpush.bf16.msra.mxu0 %v2309
    %2677 = vmatpush.bf16.msra.mxu0 %v2305
    %2678 = vmatpush.bf16.msra.mxu0 %v2301
    %2679 = vmatpush.bf16.msra.mxu0 %v2297
    %2680 = vmatpush.bf16.msra.mxu0 %v2293
    %2681 = vmatpush.bf16.msra.mxu0 %v2289
    %2682 = vmatpush.bf16.msra.mxu0 %v2285
    %2683 = vmatmul.bf16.gmra.mxu0 %v1735
    %v2684 = vpop.f32.mrf.mxu0
    %v2685 = vadd.f32 %v2672, %v2684
    %v2686 = vpop.f32.mrf.mxu0
    %2687 = vdwg.mxu0
    %2688 = vmatpush.bf16.msra.mxu0 %v2345
    %2689 = vmatpush.bf16.msra.mxu0 %v2341
    %2690 = vmatpush.bf16.msra.mxu0 %v2337
    %2691 = vmatpush.bf16.msra.mxu0 %v2333
    %2692 = vmatpush.bf16.msra.mxu0 %v2329
    %2693 = vmatpush.bf16.msra.mxu0 %v2325
    %2694 = vmatpush.bf16.msra.mxu0 %v2321
    %2695 = vmatpush.bf16.msra.mxu0 %v2317
    %2696 = vmatmul.bf16.gmra.mxu0 %v1736
    %v2697 = vpop.f32.mrf.mxu0
    %v2698 = vadd.f32 %v2685, %v2697
    %v2699 = vpop.f32.mrf.mxu0
    %2700 = vdwg.mxu0
    %2701 = vmatpush.bf16.msra.mxu0 %v2377
    %2702 = vmatpush.bf16.msra.mxu0 %v2373
    %2703 = vmatpush.bf16.msra.mxu0 %v2369
    %2704 = vmatpush.bf16.msra.mxu0 %v2365
    %2705 = vmatpush.bf16.msra.mxu0 %v2361
    %2706 = vmatpush.bf16.msra.mxu0 %v2357
    %2707 = vmatpush.bf16.msra.mxu0 %v2353
    %2708 = vmatpush.bf16.msra.mxu0 %v2349
    %2709 = vmatmul.bf16.gmra.mxu0 %v1737
    %v2710 = vpop.f32.mrf.mxu0
    %v2711 = vadd.f32 %v2698, %v2710
    %v2712 = vpop.f32.mrf.mxu0
    %2713 = vdwg.mxu0
    %v2714 = vld [vmem:[#allocation10] sm:$0xf]
    %v2716 = vperm.slane %v2714, 0
    %v2717 = vperm.slane %v2714, 1
    %v2718 = vperm.slane %v2714, 2
    %v2719 = vperm.slane %v2714, 3
    %vm2724 = vcmp.gt.f32.partialorder %v2555, %v2716
    %vm2725 = vcmp.gt.f32.partialorder %v2607, %v2717
    %vm2726 = vcmp.gt.f32.partialorder %v2659, %v2718
    %vm2727 = vcmp.gt.f32.partialorder %v2711, %v2719
    %v2728 = vsel %vm2724, 1, 0
    %v2729 = vsel %vm2725, 1, 0
    %v2730 = vsel %vm2726, 1, 0
    %v2731 = vsel %vm2727, 1, 0
    %v2732 = vcvt.s32.f32 %v2728
    %v2733 = vcvt.s32.f32 %v2729
    %v2734 = vcvt.s32.f32 %v2730
    %v2735 = vcvt.s32.f32 %v2731
    %v2736 = vpack.c.bf16 %v2732, %v2732
    %v2737 = vpack.c.bf16 %v2733, %v2733
    %v2738 = vpack.c.bf16 %v2734, %v2734
    %v2739 = vpack.c.bf16 %v2735, %v2735
    %v2740 = vld [vmem:[#allocation11] sm:$0xf]
    %v2741 = vld [vmem:[#allocation11 + $0x4] sm:$0xf]
    %v2742 = vld [vmem:[#allocation11 + $0x8] sm:$0xf]
    %v2743 = vld [vmem:[#allocation11 + $0xc] sm:$0xf]
    %v2744 = vld [vmem:[#allocation11 + $0x10] sm:$0xf]
    %v2745 = vld [vmem:[#allocation11 + $0x14] sm:$0xf]
    %v2746 = vld [vmem:[#allocation11 + $0x18] sm:$0xf]
    %v2747 = vld [vmem:[#allocation11 + $0x1c] sm:$0xf]
    %v2748 = vld [vmem:[#allocation11 + $0x20] sm:$0xf]
    %v2749 = vld [vmem:[#allocation11 + $0x24] sm:$0xf]
    %v2750 = vld [vmem:[#allocation11 + $0x28] sm:$0xf]
    %v2751 = vld [vmem:[#allocation11 + $0x2c] sm:$0xf]
    %v2752 = vld [vmem:[#allocation11 + $0x30] sm:$0xf]
    %v2753 = vld [vmem:[#allocation11 + $0x34] sm:$0xf]
    %v2754 = vld [vmem:[#allocation11 + $0x38] sm:$0xf]
    %v2755 = vld [vmem:[#allocation11 + $0x3c] sm:$0xf]
    %v2756 = vld [vmem:[#allocation11 + $0x40] sm:$0xf]
    %v2757 = vld [vmem:[#allocation11 + $0x44] sm:$0xf]
    %v2758 = vld [vmem:[#allocation11 + $0x48] sm:$0xf]
    %v2759 = vld [vmem:[#allocation11 + $0x4c] sm:$0xf]
    %v2760 = vld [vmem:[#allocation11 + $0x50] sm:$0xf]
    %v2761 = vld [vmem:[#allocation11 + $0x54] sm:$0xf]
    %v2762 = vld [vmem:[#allocation11 + $0x58] sm:$0xf]
    %v2763 = vld [vmem:[#allocation11 + $0x5c] sm:$0xf]
    %v2764 = vld [vmem:[#allocation11 + $0x60] sm:$0xf]
    %v2765 = vld [vmem:[#allocation11 + $0x64] sm:$0xf]
    %v2766 = vld [vmem:[#allocation11 + $0x68] sm:$0xf]
    %v2767 = vld [vmem:[#allocation11 + $0x6c] sm:$0xf]
    %v2768 = vld [vmem:[#allocation11 + $0x70] sm:$0xf]
    %v2769 = vld [vmem:[#allocation11 + $0x74] sm:$0xf]
    %v2770 = vld [vmem:[#allocation11 + $0x78] sm:$0xf]
    %v2771 = vld [vmem:[#allocation11 + $0x7c] sm:$0xf]
    %v2772 = vld [vmem:[#allocation11 + $0x80] sm:$0xf]
    %v2773 = vld [vmem:[#allocation11 + $0x84] sm:$0xf]
    %v2774 = vld [vmem:[#allocation11 + $0x88] sm:$0xf]
    %v2775 = vld [vmem:[#allocation11 + $0x8c] sm:$0xf]
    %v2776 = vld [vmem:[#allocation11 + $0x90] sm:$0xf]
    %v2777 = vld [vmem:[#allocation11 + $0x94] sm:$0xf]
    %v2778 = vld [vmem:[#allocation11 + $0x98] sm:$0xf]
    %v2779 = vld [vmem:[#allocation11 + $0x9c] sm:$0xf]
    %v2780 = vld [vmem:[#allocation11 + $0xa0] sm:$0xf]
    %v2781 = vld [vmem:[#allocation11 + $0xa4] sm:$0xf]
    %v2782 = vld [vmem:[#allocation11 + $0xa8] sm:$0xf]
    %v2783 = vld [vmem:[#allocation11 + $0xac] sm:$0xf]
    %v2784 = vld [vmem:[#allocation11 + $0xb0] sm:$0xf]
    %v2785 = vld [vmem:[#allocation11 + $0xb4] sm:$0xf]
    %v2786 = vld [vmem:[#allocation11 + $0xb8] sm:$0xf]
    %v2787 = vld [vmem:[#allocation11 + $0xbc] sm:$0xf]
    %v2788 = vld [vmem:[#allocation11 + $0xc0] sm:$0xf]
    %v2789 = vld [vmem:[#allocation11 + $0xc4] sm:$0xf]
    %v2790 = vld [vmem:[#allocation11 + $0xc8] sm:$0xf]
    %v2791 = vld [vmem:[#allocation11 + $0xcc] sm:$0xf]
    %v2792 = vld [vmem:[#allocation11 + $0xd0] sm:$0xf]
    %v2793 = vld [vmem:[#allocation11 + $0xd4] sm:$0xf]
    %v2794 = vld [vmem:[#allocation11 + $0xd8] sm:$0xf]
    %v2795 = vld [vmem:[#allocation11 + $0xdc] sm:$0xf]
    %v2796 = vld [vmem:[#allocation11 + $0xe0] sm:$0xf]
    %v2797 = vld [vmem:[#allocation11 + $0xe4] sm:$0xf]
    %v2798 = vld [vmem:[#allocation11 + $0xe8] sm:$0xf]
    %v2799 = vld [vmem:[#allocation11 + $0xec] sm:$0xf]
    %v2800 = vld [vmem:[#allocation11 + $0xf0] sm:$0xf]
    %v2801 = vld [vmem:[#allocation11 + $0xf4] sm:$0xf]
    %v2802 = vld [vmem:[#allocation11 + $0xf8] sm:$0xf]
    %v2803 = vld [vmem:[#allocation11 + $0xfc] sm:$0xf]
    %v2868 = vunpack.c.l.b16 %v2740
    %v2869 = vunpack.c.l.b16 %v2741
    %v2870 = vunpack.c.l.b16 %v2742
    %v2871 = vunpack.c.l.b16 %v2743
    %v2872 = vunpack.c.l.b16 %v2744
    %v2873 = vunpack.c.l.b16 %v2745
    %v2874 = vunpack.c.l.b16 %v2746
    %v2875 = vunpack.c.l.b16 %v2747
    %v2876 = vunpack.c.l.b16 %v2748
    %v2877 = vunpack.c.l.b16 %v2749
    %v2878 = vunpack.c.l.b16 %v2750
    %v2879 = vunpack.c.l.b16 %v2751
    %v2880 = vunpack.c.l.b16 %v2752
    %v2881 = vunpack.c.l.b16 %v2753
    %v2882 = vunpack.c.l.b16 %v2754
    %v2883 = vunpack.c.l.b16 %v2755
    %v2884 = vunpack.c.l.b16 %v2756
    %v2885 = vunpack.c.l.b16 %v2757
    %v2886 = vunpack.c.l.b16 %v2758
    %v2887 = vunpack.c.l.b16 %v2759
    %v2888 = vunpack.c.l.b16 %v2760
    %v2889 = vunpack.c.l.b16 %v2761
    %v2890 = vunpack.c.l.b16 %v2762
    %v2891 = vunpack.c.l.b16 %v2763
    %v2892 = vunpack.c.l.b16 %v2764
    %v2893 = vunpack.c.l.b16 %v2765
    %v2894 = vunpack.c.l.b16 %v2766
    %v2895 = vunpack.c.l.b16 %v2767
    %v2896 = vunpack.c.l.b16 %v2768
    %v2897 = vunpack.c.l.b16 %v2769
    %v2898 = vunpack.c.l.b16 %v2770
    %v2899 = vunpack.c.l.b16 %v2771
    %v2900 = vunpack.c.l.b16 %v2772
    %v2901 = vunpack.c.l.b16 %v2773
    %v2902 = vunpack.c.l.b16 %v2774
    %v2903 = vunpack.c.l.b16 %v2775
    %v2904 = vunpack.c.l.b16 %v2776
    %v2905 = vunpack.c.l.b16 %v2777
    %v2906 = vunpack.c.l.b16 %v2778
    %v2907 = vunpack.c.l.b16 %v2779
    %v2908 = vunpack.c.l.b16 %v2780
    %v2909 = vunpack.c.l.b16 %v2781
    %v2910 = vunpack.c.l.b16 %v2782
    %v2911 = vunpack.c.l.b16 %v2783
    %v2912 = vunpack.c.l.b16 %v2784
    %v2913 = vunpack.c.l.b16 %v2785
    %v2914 = vunpack.c.l.b16 %v2786
    %v2915 = vunpack.c.l.b16 %v2787
    %v2916 = vunpack.c.l.b16 %v2788
    %v2917 = vunpack.c.l.b16 %v2789
    %v2918 = vunpack.c.l.b16 %v2790
    %v2919 = vunpack.c.l.b16 %v2791
    %v2920 = vunpack.c.l.b16 %v2792
    %v2921 = vunpack.c.l.b16 %v2793
    %v2922 = vunpack.c.l.b16 %v2794
    %v2923 = vunpack.c.l.b16 %v2795
    %v2924 = vunpack.c.l.b16 %v2796
    %v2925 = vunpack.c.l.b16 %v2797
    %v2926 = vunpack.c.l.b16 %v2798
    %v2927 = vunpack.c.l.b16 %v2799
    %v2928 = vunpack.c.l.b16 %v2800
    %v2929 = vunpack.c.l.b16 %v2801
    %v2930 = vunpack.c.l.b16 %v2802
    %v2931 = vunpack.c.l.b16 %v2803
    %v2932 = vpack.c.b16 %v2869, %v2868
    %v2933 = vpack.c.b16 %v2871, %v2870
    %v2934 = vpack.c.b16 %v2873, %v2872
    %v2935 = vpack.c.b16 %v2875, %v2874
    %v2936 = vpack.c.b16 %v2877, %v2876
    %v2937 = vpack.c.b16 %v2879, %v2878
    %v2938 = vpack.c.b16 %v2881, %v2880
    %v2939 = vpack.c.b16 %v2883, %v2882
    %v2940 = vpack.c.b16 %v2885, %v2884
    %v2941 = vpack.c.b16 %v2887, %v2886
    %v2942 = vpack.c.b16 %v2889, %v2888
    %v2943 = vpack.c.b16 %v2891, %v2890
    %v2944 = vpack.c.b16 %v2893, %v2892
    %v2945 = vpack.c.b16 %v2895, %v2894
    %v2946 = vpack.c.b16 %v2897, %v2896
    %v2947 = vpack.c.b16 %v2899, %v2898
    %v2948 = vpack.c.b16 %v2901, %v2900
    %v2949 = vpack.c.b16 %v2903, %v2902
    %v2950 = vpack.c.b16 %v2905, %v2904
    %v2951 = vpack.c.b16 %v2907, %v2906
    %v2952 = vpack.c.b16 %v2909, %v2908
    %v2953 = vpack.c.b16 %v2911, %v2910
    %v2954 = vpack.c.b16 %v2913, %v2912
    %v2955 = vpack.c.b16 %v2915, %v2914
    %v2956 = vpack.c.b16 %v2917, %v2916
    %v2957 = vpack.c.b16 %v2919, %v2918
    %v2958 = vpack.c.b16 %v2921, %v2920
    %v2959 = vpack.c.b16 %v2923, %v2922
    %v2960 = vpack.c.b16 %v2925, %v2924
    %v2961 = vpack.c.b16 %v2927, %v2926
    %v2962 = vpack.c.b16 %v2929, %v2928
    %v2963 = vpack.c.b16 %v2931, %v2930
    %2996 = vmatpush.bf16.msra.mxu0 %v2939
    %2997 = vmatpush.bf16.msra.mxu0 %v2938
    %2998 = vmatpush.bf16.msra.mxu0 %v2937
    %2999 = vmatpush.bf16.msra.mxu0 %v2936
    %3000 = vmatpush.bf16.msra.mxu0 %v2935
    %3001 = vmatpush.bf16.msra.mxu0 %v2934
    %3002 = vmatpush.bf16.msra.mxu0 %v2933
    %3003 = vmatpush.bf16.msra.mxu0 %v2932
    %3004 = vmatmul.bf16.gmra.mxu0 %v2736
    %v3005 = vpop.f32.mrf.mxu0
    %v3006 = vadd.f32 0.0, %v3005
    %v3007 = vpop.f32.mrf.mxu0
    %3008 = vdwg.mxu0
    %3009 = vmatpush.bf16.msra.mxu0 %v2947
    %3010 = vmatpush.bf16.msra.mxu0 %v2946
    %3011 = vmatpush.bf16.msra.mxu0 %v2945
    %3012 = vmatpush.bf16.msra.mxu0 %v2944
    %3013 = vmatpush.bf16.msra.mxu0 %v2943
    %3014 = vmatpush.bf16.msra.mxu0 %v2942
    %3015 = vmatpush.bf16.msra.mxu0 %v2941
    %3016 = vmatpush.bf16.msra.mxu0 %v2940
    %3017 = vmatmul.bf16.gmra.mxu0 %v2737
    %v3018 = vpop.f32.mrf.mxu0
    %v3019 = vadd.f32 %v3006, %v3018
    %v3020 = vpop.f32.mrf.mxu0
    %3021 = vdwg.mxu0
    %3022 = vmatpush.bf16.msra.mxu0 %v2955
    %3023 = vmatpush.bf16.msra.mxu0 %v2954
    %3024 = vmatpush.bf16.msra.mxu0 %v2953
    %3025 = vmatpush.bf16.msra.mxu0 %v2952
    %3026 = vmatpush.bf16.msra.mxu0 %v2951
    %3027 = vmatpush.bf16.msra.mxu0 %v2950
    %3028 = vmatpush.bf16.msra.mxu0 %v2949
    %3029 = vmatpush.bf16.msra.mxu0 %v2948
    %3030 = vmatmul.bf16.gmra.mxu0 %v2738
    %v3031 = vpop.f32.mrf.mxu0
    %v3032 = vadd.f32 %v3019, %v3031
    %v3033 = vpop.f32.mrf.mxu0
    %3034 = vdwg.mxu0
    %3035 = vmatpush.bf16.msra.mxu0 %v2963
    %3036 = vmatpush.bf16.msra.mxu0 %v2962
    %3037 = vmatpush.bf16.msra.mxu0 %v2961
    %3038 = vmatpush.bf16.msra.mxu0 %v2960
    %3039 = vmatpush.bf16.msra.mxu0 %v2959
    %3040 = vmatpush.bf16.msra.mxu0 %v2958
    %3041 = vmatpush.bf16.msra.mxu0 %v2957
    %3042 = vmatpush.bf16.msra.mxu0 %v2956
    %3043 = vmatmul.bf16.gmra.mxu0 %v2739
    %v3044 = vpop.f32.mrf.mxu0
    %v3045 = vadd.f32 %v3032, %v3044
    %v3046 = vpop.f32.mrf.mxu0
    %3047 = vdwg.mxu0
    %v3048 = vld [vmem:[%s6] sm:$0x1]
    %v3050 = vperm.slane %v3048, 0
    %vm3052 = vcmp.gt.f32.partialorder %v3045, %v3050
    %v3053 = vsel %vm3052, 1, 0
    %v3054 = vcvt.s32.f32 %v3053
    %v3055 = vpack.c.bf16 %v3054, %v3054
    %v3056 = vld [vmem:[#allocation13] sm:$0xf]
    %v3057 = vld [vmem:[#allocation13 + $0x4] sm:$0xf]
    %v3058 = vld [vmem:[#allocation13 + $0x8] sm:$0xf]
    %v3059 = vld [vmem:[#allocation13 + $0xc] sm:$0xf]
    %v3060 = vld [vmem:[#allocation13 + $0x10] sm:$0xf]
    %v3061 = vld [vmem:[#allocation13 + $0x14] sm:$0xf]
    %v3062 = vld [vmem:[#allocation13 + $0x18] sm:$0xf]
    %v3063 = vld [vmem:[#allocation13 + $0x1c] sm:$0xf]
    %v3064 = vld [vmem:[#allocation13 + $0x20] sm:$0xf]
    %v3065 = vld [vmem:[#allocation13 + $0x24] sm:$0xf]
    %v3066 = vld [vmem:[#allocation13 + $0x28] sm:$0xf]
    %v3067 = vld [vmem:[#allocation13 + $0x2c] sm:$0xf]
    %v3068 = vld [vmem:[#allocation13 + $0x30] sm:$0xf]
    %v3069 = vld [vmem:[#allocation13 + $0x34] sm:$0xf]
    %v3070 = vld [vmem:[#allocation13 + $0x38] sm:$0xf]
    %v3071 = vld [vmem:[#allocation13 + $0x3c] sm:$0xf]
    %v3088 = vunpack.c.l.b16 %v3056
    %v3089 = vunpack.c.l.b16 %v3057
    %v3090 = vunpack.c.l.b16 %v3058
    %v3091 = vunpack.c.l.b16 %v3059
    %v3092 = vunpack.c.l.b16 %v3060
    %v3093 = vunpack.c.l.b16 %v3061
    %v3094 = vunpack.c.l.b16 %v3062
    %v3095 = vunpack.c.l.b16 %v3063
    %v3096 = vunpack.c.l.b16 %v3064
    %v3097 = vunpack.c.l.b16 %v3065
    %v3098 = vunpack.c.l.b16 %v3066
    %v3099 = vunpack.c.l.b16 %v3067
    %v3100 = vunpack.c.l.b16 %v3068
    %v3101 = vunpack.c.l.b16 %v3069
    %v3102 = vunpack.c.l.b16 %v3070
    %v3103 = vunpack.c.l.b16 %v3071
    %v3104 = vpack.c.b16 %v3089, %v3088
    %v3105 = vpack.c.b16 %v3091, %v3090
    %v3106 = vpack.c.b16 %v3093, %v3092
    %v3107 = vpack.c.b16 %v3095, %v3094
    %v3108 = vpack.c.b16 %v3097, %v3096
    %v3109 = vpack.c.b16 %v3099, %v3098
    %v3110 = vpack.c.b16 %v3101, %v3100
    %v3111 = vpack.c.b16 %v3103, %v3102
    %3120 = vmatpush.bf16.msra.mxu0 %v3111
    %3121 = vmatpush.bf16.msra.mxu0 %v3110
    %3122 = vmatpush.bf16.msra.mxu0 %v3109
    %3123 = vmatpush.bf16.msra.mxu0 %v3108
    %3124 = vmatpush.bf16.msra.mxu0 %v3107
    %3125 = vmatpush.bf16.msra.mxu0 %v3106
    %3126 = vmatpush.bf16.msra.mxu0 %v3105
    %3127 = vmatpush.bf16.msra.mxu0 %v3104
    %3128 = vmatmul.bf16.gmra.mxu0 %v3055
    %v3129 = vpop.f32.mrf.mxu0
    %v3130 = vadd.f32 0.0, %v3129
    %v3131 = vpop.f32.mrf.mxu0
    %3132 = vdwg.mxu0
    %v3133 = vld [vmem:[%s8] sm:$0x1]
    %v3135 = vperm.slane %v3133, 0
    %v3137 = vmul.f32 %v3130, %v3135
    %v3138 = vld [vmem:[%s9] sm:$0x1]
    %v3140 = vperm.slane %v3138, 0
    %v3142 = vadd.f32 %v3137, %v3140
    %3143 = vst [vmem:[#allocation14] sm:$0xff] %v3142
    // Predicated region
    $region70: #{tpu_custom_call.1} parent=1 // pred_check
      _
    $region71: #{tpu_custom_call.1} parent=1 // pred_check_branch
      %3145 = sbr.rel (0) target = $region73
    $region72: #{tpu_custom_call.1} parent=1 // pred_region
      %3147 = vsyncadd [#allocation4], 0
      %s3149 = sshll.u32 [#allocation14], 4
      %s3150 = int_to_ptr.vmem [resolvable:$true] %s3149
      %s3151 = sshll.u32 %s10, 4
      %s3152 = int_to_ptr.hbm [resolvable:$true] %s3151
      %3154 = dma.vmem_to_hbm [thread:$0]  %s3150, 128, %s3152, [#allocation4]
    $region73: #{tpu_custom_call.1} parent=1 // pred_fallthru
      _
    // Predicated region
    $region74: #{tpu_custom_call.1} parent=1 // pred_check
      _
    $region75: #{tpu_custom_call.1} parent=1 // pred_check_branch
      %3156 = sbr.rel (0) target = $region77
    $region76: #{tpu_custom_call.1} parent=1 // pred_region
      %3158 = dma.done [#allocation4], 128
    $region77: #{tpu_custom_call.1} parent=1 // pred_fallthru
      _
    %3159 = vsyncpa [#allocation3], 1
    %3160 = vsyncpa [#allocation6], 1
    %3161 = vsyncpa [#allocation9], 1
    %3162 = vsyncpa [#allocation12], 1
    %3163 = vsyncpa [#allocation4], 1

</llo_original>
